<compile_context>
chip_gen: v7x
topology: tpu7x:2x2x1
jax: 0.10.0
libtpu: 0.0.40
codegen_flags: <defaults>
</compile_context>

<pallas_src>
import numpy as np
import jax
import jax.numpy as jnp
from jax import lax
from jax.experimental import pallas as pl
from jax.experimental.pallas import tpu as pltpu

LINK_MODES = 6


# -----------------------------------------------------------------------------
# Fused Pallas kernel: full GraphClassifier forward (ablation=0 path)
# -----------------------------------------------------------------------------
def fused_forward_kernel(ne_ref, tgt_ref,                     # SMEM int32 index vectors
                         a2_ref, a1_ref, h0_ref,              # VMEM inputs
                         w1_ref, b1_ref, w2_ref, b2_ref,
                         wfc_ref, bfc_ref,
                         out_ref,                              # VMEM output (B, 1)
                         hw_ref, h1_ref, agg_ref, gat_ref):    # VMEM scratch
    """out = fc( normalize( h1[target_edges] + relu(A1_cat @ HW2_stack) ) )
       with h1 = h0 ; h1[neighbor_edges[t]] += relu(A2_cat @ HW1_stack)[t]."""
    E, Dp = h0_ref.shape
    T2 = agg_ref.shape[0]
    B = gat_ref.shape[0]

    h0 = h0_ref[...]                                   # (E, Dp) f32
    h0b = h0.astype(jnp.bfloat16)

    # ---- stage 1: per-mode slabs fc_reld1[i](h0) stacked along K, then ONE
    #      long-K contraction  (T2, 6E) @ (6E, Dp)  ==  sum_i A2_i @ HW1_i ------
    for i in range(LINK_MODES):                        # static unroll over the 6 modes
        hw_ref[i * E:(i + 1) * E, :] = (
            jnp.dot(h0b, w1_ref[i], preferred_element_type=jnp.float32) + b1_ref[i]
        ).astype(jnp.bfloat16)
    agg_ref[...] = jnp.maximum(                        # h_0_N = relu(...)
        jnp.dot(a2_ref[...], hw_ref[...], preferred_element_type=jnp.float32), 0.0)

    # ---- stage 2: h1 = h0 ; h1[neighbor_edges[t]] += h_0_N[t] ----------------
    # Index-driven dynamic row scatter-add (no one-hot matmul).
    h1_ref[...] = h0

    def scatter_body(t, carry):
        e = ne_ref[t]                                  # SMEM scalar read
        h1_ref[pl.ds(e, 1), :] = h1_ref[pl.ds(e, 1), :] + agg_ref[pl.ds(t, 1), :]
        return carry

    lax.fori_loop(0, T2, scatter_body, 0)

    # ---- stage 3: per-mode slabs fc_reld2[i](h1), then ONE long-K contraction -
    h1 = h1_ref[...]
    h1b = h1.astype(jnp.bfloat16)
    for i in range(LINK_MODES):
        hw_ref[i * E:(i + 1) * E, :] = (
            jnp.dot(h1b, w2_ref[i], preferred_element_type=jnp.float32) + b2_ref[i]
        ).astype(jnp.bfloat16)
    h1n = jnp.maximum(                                 # h_1_N = relu(...)   (B, Dp)
        jnp.dot(a1_ref[...], hw_ref[...], preferred_element_type=jnp.float32), 0.0)

    # ---- gather h1 rows at the target edge ids (index based, no one-hot) -----
    def gather_body(t, carry):
        gat_ref[pl.ds(t, 1), :] = h1_ref[pl.ds(tgt_ref[t], 1), :]
        return carry

    lax.fori_loop(0, B, gather_body, 0)

    # ---- head: h2 -> F.normalize(p=2, dim=-1) via rsqrt -> fc_layer ----------
    h2 = gat_ref[...] + h1n                            # (B, Dp)
    ssq = jnp.sum(h2 * h2, axis=-1, keepdims=True)
    inv = lax.rsqrt(jnp.maximum(ssq, 1e-24))           # == 1 / max(||h2||, 1e-12)
    g = h2 * inv
    # fc_layer(D -> 1) as a VPU row-reduce; TODO(synk): emit (1, B) lane-dense if B grows.
    out_ref[...] = jnp.sum(g * wfc_ref[...], axis=-1, keepdims=True) + bfc_ref[...]


# -----------------------------------------------------------------------------
# Graph glue (numpy) — mirrors the sparse-COO construction in rel_aggr()
# -----------------------------------------------------------------------------
def build_link_mode_masks(src, dst, u_node, v_node, num_nodes, num_edges):
    """Dense equivalents of the 6 sparse link-mode matrices, order:
       [in_edge_out, out_edge_out, in_edge_in, out_edge_in, edge_mode_5, edge_mode_6]."""
    node_ids = np.arange(num_nodes)[:, None]
    counts_u = np.bincount(u_node, minlength=num_nodes).astype(np.float32)
    counts_v = np.bincount(v_node, minlength=num_nodes).astype(np.float32)

    dst_hit = (dst[None, :] == node_ids).astype(np.float32)    # (num_nodes, E)
    src_hit = (src[None, :] == node_ids).astype(np.float32)

    in_edge_out = (dst_hit * counts_u[:, None])[u_node]        # (T, E)
    out_edge_out = (src_hit * counts_u[:, None])[u_node]
    in_edge_in = (dst_hit * counts_v[:, None])[v_node]
    out_edge_in = (src_hit * counts_v[:, None])[v_node]

    m5 = out_edge_out * in_edge_in
    m6 = in_edge_out * out_edge_in
    out_edge_out = out_edge_out - m5
    in_edge_in = in_edge_in - m5
    in_edge_out = in_edge_out - m6
    out_edge_in = out_edge_in - m6
    return np.stack([in_edge_out, out_edge_out, in_edge_in, out_edge_in, m5, m6], 0)


def prepare_host_data(params, graph, Dp):
    """Host-side graph bookkeeping + mask construction (DGL-equivalent, numpy)."""
    src, dst, etype = graph["src"], graph["dst"], graph["etype"]
    head_ids, tail_ids = graph["head_ids"], graph["tail_ids"]
    num_nodes, num_edges = int(graph["num_nodes"]), int(graph["num_edges"])
    D = params["rel_emb"].shape[1]
    assert D <= Dp
    pd = Dp - D

    # unique neighbor edges of the head/tail nodes
    inc_mask = (np.isin(dst, head_ids) | np.isin(src, head_ids)
                | np.isin(dst, tail_ids) | np.isin(src, tail_ids))
    neighbor_edges = np.nonzero(inc_mask)[0].astype(np.int32)
    neighbor_u = src[neighbor_edges]
    neighbor_v = dst[neighbor_edges]

    # link-mode masks (6, T, E); (edge2rel / neighbor_edges2rels only feed the
    # target2nei_atten=True path -> unused here)
    A2 = build_link_mode_masks(src, dst, neighbor_u, neighbor_v, num_nodes, num_edges)
    A1 = build_link_mode_masks(src, dst, head_ids, tail_ids, num_nodes, num_edges)
    # long-K layout: [A_0 | ... | A_5] along the contraction axis (matches the hw slab stack)
    A2_cat = np.concatenate([A2[i] for i in range(LINK_MODES)], axis=1)   # (T2, 6E)
    A1_cat = np.concatenate([A1[i] for i in range(LINK_MODES)], axis=1)   # (B , 6E)

    # target edge ids: en_g.edge_id(head_i, tail_i, return_array=True)[0]
    target_edge_ids = []
    for h, t in zip(head_ids, tail_ids):
        eids = np.nonzero((src == h) & (dst == t))[0]
        assert eids.size > 0, "target link must exist as an edge"
        target_edge_ids.append(int(eids[0]))
    target_edge_ids = np.asarray(target_edge_ids, np.int32)

    # h0 = rel_emb(edge_type), zero-padded to Dp lanes (exact)
    rel_emb = np.asarray(params["rel_emb"], np.float32)
    h0_padded = np.pad(rel_emb[etype], ((0, 0), (0, pd)))

    return dict(A2=A2, A1=A1, A2_cat=A2_cat, A1_cat=A1_cat,
                neighbor_edges=neighbor_edges, target_edge_ids=target_edge_ids,
                h0_padded=h0_padded, num_edges=num_edges)


def pack_params(params, Dp):
    """Zero-pad weights to Dp=128 lanes (exact) and cast MXU operands to bf16."""
    D = params["rel_emb"].shape[1]
    pd = Dp - D
    w1 = np.pad(np.asarray(params["fc_reld1_w"], np.float32), ((0, 0), (0, pd), (0, pd)))
    w2 = np.pad(np.asarray(params["fc_reld2_w"], np.float32), ((0, 0), (0, pd), (0, pd)))
    b1 = np.pad(np.asarray(params["fc_reld1_b"], np.float32), ((0, 0), (0, 0), (0, pd)))
    b2 = np.pad(np.asarray(params["fc_reld2_b"], np.float32), ((0, 0), (0, 0), (0, pd)))
    wfc = np.pad(np.asarray(params["fc_layer_w"], np.float32).reshape(1, D), ((0, 0), (0, pd)))
    bfc = np.asarray(params["fc_layer_b"], np.float32).reshape(1, 1)
    return dict(w1=jnp.asarray(w1, jnp.bfloat16), b1=jnp.asarray(b1, jnp.float32),
                w2=jnp.asarray(w2, jnp.bfloat16), b2=jnp.asarray(b2, jnp.float32),
                wfc=jnp.asarray(wfc, jnp.float32), bfc=jnp.asarray(bfc, jnp.float32))


# -----------------------------------------------------------------------------
# Forward pass wrapper (ablation=0, target2nei_atten=False, conc=False)
# -----------------------------------------------------------------------------
def graph_classifier_forward(params, graph, Dp=128):
    host = prepare_host_data(params, graph, Dp)
    kp = pack_params(params, Dp)
    E = host["num_edges"]
    T2 = host["A2_cat"].shape[0]
    B = host["A1_cat"].shape[0]

    args = (jnp.asarray(host["neighbor_edges"], jnp.int32),    # SMEM
            jnp.asarray(host["target_edge_ids"], jnp.int32),   # SMEM
            jnp.asarray(host["A2_cat"], jnp.bfloat16),         # (T2, 6E) integer-valued, exact in bf16
            jnp.asarray(host["A1_cat"], jnp.bfloat16),         # (B , 6E)
            jnp.asarray(host["h0_padded"], jnp.float32),       # (E, Dp)
            kp["w1"], kp["b1"], kp["w2"], kp["b2"], kp["wfc"], kp["bfc"])

    flops = (2 * LINK_MODES * (2 * E * Dp * Dp)     # 12 per-mode slab matmuls
             + 2 * T2 * (LINK_MODES * E) * Dp       # stage-1 long-K contraction
             + 2 * B * (LINK_MODES * E) * Dp        # stage-3 long-K contraction
             + 10 * B * Dp)                         # normalize + head
    bytes_accessed = sum(int(np.prod(a.shape)) * a.dtype.itemsize for a in args) + B * 4

    in_specs = ([pl.BlockSpec(memory_space=pltpu.MemorySpace.SMEM)] * 2
                + [pl.BlockSpec(memory_space=pltpu.MemorySpace.VMEM)] * 9)

    out = pl.pallas_call(
        fused_forward_kernel,
        out_shape=jax.ShapeDtypeStruct((B, 1), jnp.float32),
        in_specs=in_specs,
        out_specs=pl.BlockSpec(memory_space=pltpu.MemorySpace.VMEM),
        scratch_shapes=[
            pltpu.VMEM((LINK_MODES * E, Dp), jnp.bfloat16),    # hw slab stack (6E, Dp)
            pltpu.VMEM((E, Dp), jnp.float32),                  # h1
            pltpu.VMEM((T2, Dp), jnp.float32),                 # h_0_N (stage-1 aggregation)
            pltpu.VMEM((B, Dp), jnp.float32),                  # gathered target-edge rows
        ],
        compiler_params=pltpu.CompilerParams(
            # toy sizes need < 1 MiB; 32 MiB is safe on every generation
            # (re-budget per generation once the scale-time grid exists)
            vmem_limit_bytes=32 * 1024 * 1024),
        cost_estimate=pl.CostEstimate(flops=flops, transcendentals=B,
                                      bytes_accessed=bytes_accessed),
    )(*args)
    return out, host


# -----------------------------------------------------------------------------
# Pure f32 NumPy reference of the PyTorch forward (eval-mode dropout, ablation=0)
# -----------------------------------------------------------------------------
def reference_forward(params, graph, host):
    rel_emb = np.asarray(params["rel_emb"], np.float32)
    W1 = np.asarray(params["fc_reld1_w"], np.float32)
    b1 = np.asarray(params["fc_reld1_b"], np.float32)
    W2 = np.asarray(params["fc_reld2_w"], np.float32)
    b2 = np.asarray(params["fc_reld2_b"], np.float32)
    wfc = np.asarray(params["fc_layer_w"], np.float32)
    bfc = np.asarray(params["fc_layer_b"], np.float32)

    h0 = rel_emb[graph["etype"]]
    A2, A1 = host["A2"], host["A1"]
    h0n = sum(A2[i] @ (h0 @ W1[i] + b1[i]) for i in range(LINK_MODES))
    h0n = np.maximum(h0n, 0.0)
    h1 = h0.copy()
    for i, e in enumerate(host["neighbor_edges"]):
        h1[e] = h1[e] + h0n[i]
    h1x = h1[host["target_edge_ids"]]
    h1n = sum(A1[i] @ (h1 @ W2[i] + b2[i]) for i in range(LINK_MODES))
    h1n = np.maximum(h1n, 0.0)
    h2 = h1x + h1n
    nrm = np.maximum(np.sqrt((h2 * h2).sum(-1, keepdims=True)), 1e-12)
    g = h2 / nrm
    return g @ wfc + bfc


# -----------------------------------------------------------------------------
# Deterministic parameter / input construction
# -----------------------------------------------------------------------------
def init_params(key, num_rels, rel_emb_dim):
    D = rel_emb_dim
    ks = jax.random.split(key, 8)
    scale = 1.0 / np.sqrt(D)
    return {
        # nn.Embedding(num_rels, D), normal init
        "rel_emb": jax.random.normal(ks[0], (num_rels, D), jnp.float32),
        # 6x nn.Linear(D, D) — weights stored pre-transposed (in, out)
        "fc_reld1_w": jax.random.uniform(ks[1], (6, D, D), jnp.float32, -scale, scale),
        "fc_reld1_b": jax.random.uniform(ks[2], (6, 1, D), jnp.float32, -scale, scale),
        "fc_reld2_w": jax.random.uniform(ks[3], (6, D, D), jnp.float32, -scale, scale),
        "fc_reld2_b": jax.random.uniform(ks[4], (6, 1, D), jnp.float32, -scale, scale),
        # nn.Linear(D, 1)
        "fc_layer_w": jax.random.uniform(ks[5], (D, 1), jnp.float32, -scale, scale),
        "fc_layer_b": jax.random.uniform(ks[6], (1, 1), jnp.float32, -scale, scale),
    }


def build_synthetic_graph(num_rels):
    # 10 nodes, 16 directed edges; target links: (0 -> 2) and (1 -> 3)
    src = np.array([0, 1, 4, 0, 6, 2, 5, 1, 7, 3, 4, 5, 6, 7, 2, 3], dtype=np.int32)
    dst = np.array([2, 3, 0, 5, 2, 7, 1, 6, 3, 4, 5, 6, 7, 4, 1, 0], dtype=np.int32)
    num_edges = src.shape[0]
    etype = (np.arange(num_edges) % num_rels).astype(np.int32)
    return {
        "src": src, "dst": dst, "etype": etype,
        "num_nodes": 10, "num_edges": num_edges,
        "head_ids": np.array([0, 1], dtype=np.int32),   # ndata['id'] == 1
        "tail_ids": np.array([2, 3], dtype=np.int32),   # ndata['id'] == 2
        "rel_labels": np.array([1, 2], dtype=np.int32),
    }


if __name__ == "__main__":
    num_rels = 4
    rel_emb_dim = 32

    key = jax.random.PRNGKey(0)
    params = init_params(key, num_rels, rel_emb_dim)
    graph = build_synthetic_graph(num_rels)

    out, host = graph_classifier_forward(params, graph)
    out = jax.block_until_ready(out)
    assert out.shape == (2, 1) and out.dtype == jnp.float32
    assert bool(jnp.all(jnp.isfinite(out)))

    # f32 reference of the module forward; loose tolerance absorbs bf16 MXU operands
    ref = reference_forward(params, graph, host)
    np.testing.assert_allclose(np.asarray(out), ref, rtol=5e-2, atol=5e-2)
    print("KERNEL_OK")
</pallas_src>

<mosaic_0001>
module attributes {stable_mosaic.version = 11 : i64} {
  func.func @fused_forward_kernel(%arg0: memref<12xi32, #tpu.memory_space<smem>>, %arg1: memref<2xi32, #tpu.memory_space<smem>>, %arg2: memref<12x96xbf16, #tpu.memory_space<vmem>>, %arg3: memref<2x96xbf16, #tpu.memory_space<vmem>>, %arg4: memref<16x128xf32, #tpu.memory_space<vmem>>, %arg5: memref<6x128x128xbf16, #tpu.memory_space<vmem>>, %arg6: memref<6x1x128xf32, #tpu.memory_space<vmem>>, %arg7: memref<6x128x128xbf16, #tpu.memory_space<vmem>>, %arg8: memref<6x1x128xf32, #tpu.memory_space<vmem>>, %arg9: memref<1x128xf32, #tpu.memory_space<vmem>>, %arg10: memref<1x1xf32, #tpu.memory_space<vmem>>, %arg11: memref<2x1xf32, #tpu.memory_space<vmem>>, %arg12: memref<96x128xbf16, #tpu.memory_space<vmem>>, %arg13: memref<16x128xf32, #tpu.memory_space<vmem>>, %arg14: memref<12x128xf32, #tpu.memory_space<vmem>>, %arg15: memref<2x128xf32, #tpu.memory_space<vmem>>) attributes {dimension_semantics = [], scalar_prefetch = 0 : i64, scratch_operands = 4 : i64, tpu.core_type = #tpu.core_type<tc>} {
    %c0 = arith.constant 0 : index
    %c0_0 = arith.constant 0 : index
    %0 = vector.load %arg4[%c0, %c0_0] : memref<16x128xf32, #tpu.memory_space<vmem>>, vector<16x128xf32>
    %1 = arith.truncf %0 : vector<16x128xf32> to vector<16x128xbf16>
    %c0_1 = arith.constant 0 : index
    %c0_2 = arith.constant 0 : index
    %c0_3 = arith.constant 0 : index
    %2 = vector.load %arg5[%c0_1, %c0_2, %c0_3] : memref<6x128x128xbf16, #tpu.memory_space<vmem>>, vector<1x128x128xbf16>
    %3 = vector.shape_cast %2 : vector<1x128x128xbf16> to vector<128x128xbf16>
    %cst = arith.constant dense<0.000000e+00> : vector<16x128xf32>
    %4 = tpu.matmul %1, %3, %cst {dimension_numbers = #tpu.dot_dimension_numbers<[1], [0], [0], [1], [0, 0, 1, 1], [], []>} : vector<16x128xbf16>, vector<128x128xbf16>, vector<16x128xf32> -> vector<16x128xf32>
    %c0_4 = arith.constant 0 : index
    %c0_5 = arith.constant 0 : index
    %c0_6 = arith.constant 0 : index
    %5 = vector.load %arg6[%c0_4, %c0_5, %c0_6] : memref<6x1x128xf32, #tpu.memory_space<vmem>>, vector<1x1x128xf32>
    %6 = vector.shape_cast %5 : vector<1x1x128xf32> to vector<1x128xf32>
    %7 = vector.broadcast %6 : vector<1x128xf32> to vector<16x128xf32>
    %8 = arith.addf %4, %7 : vector<16x128xf32>
    %9 = arith.truncf %8 : vector<16x128xf32> to vector<16x128xbf16>
    %c0_7 = arith.constant 0 : index
    %c0_8 = arith.constant 0 : index
    %10 = vector.load %arg12[%c0_7, %c0_8] : memref<96x128xbf16, #tpu.memory_space<vmem>>, vector<16x128xbf16>
    tpu.vector_store %arg12[%c0_7, %c0_8], %9 {strides = array<i32>} : memref<96x128xbf16, #tpu.memory_space<vmem>>, vector<16x128xbf16>,
    %c1 = arith.constant 1 : index
    %c0_9 = arith.constant 0 : index
    %c0_10 = arith.constant 0 : index
    %11 = vector.load %arg5[%c1, %c0_9, %c0_10] : memref<6x128x128xbf16, #tpu.memory_space<vmem>>, vector<1x128x128xbf16>
    %12 = vector.shape_cast %11 : vector<1x128x128xbf16> to vector<128x128xbf16>
    %cst_11 = arith.constant dense<0.000000e+00> : vector<16x128xf32>
    %13 = tpu.matmul %1, %12, %cst_11 {dimension_numbers = #tpu.dot_dimension_numbers<[1], [0], [0], [1], [0, 0, 1, 1], [], []>} : vector<16x128xbf16>, vector<128x128xbf16>, vector<16x128xf32> -> vector<16x128xf32>
    %c1_12 = arith.constant 1 : index
    %c0_13 = arith.constant 0 : index
    %c0_14 = arith.constant 0 : index
    %14 = vector.load %arg6[%c1_12, %c0_13, %c0_14] : memref<6x1x128xf32, #tpu.memory_space<vmem>>, vector<1x1x128xf32>
    %15 = vector.shape_cast %14 : vector<1x1x128xf32> to vector<1x128xf32>
    %16 = vector.broadcast %15 : vector<1x128xf32> to vector<16x128xf32>
    %17 = arith.addf %13, %16 : vector<16x128xf32>
    %18 = arith.truncf %17 : vector<16x128xf32> to vector<16x128xbf16>
    %c16 = arith.constant 16 : index
    %c0_15 = arith.constant 0 : index
    %19 = vector.load %arg12[%c16, %c0_15] : memref<96x128xbf16, #tpu.memory_space<vmem>>, vector<16x128xbf16>
    tpu.vector_store %arg12[%c16, %c0_15], %18 {strides = array<i32>} : memref<96x128xbf16, #tpu.memory_space<vmem>>, vector<16x128xbf16>,
    %c2 = arith.constant 2 : index
    %c0_16 = arith.constant 0 : index
    %c0_17 = arith.constant 0 : index
    %20 = vector.load %arg5[%c2, %c0_16, %c0_17] : memref<6x128x128xbf16, #tpu.memory_space<vmem>>, vector<1x128x128xbf16>
    %21 = vector.shape_cast %20 : vector<1x128x128xbf16> to vector<128x128xbf16>
    %cst_18 = arith.constant dense<0.000000e+00> : vector<16x128xf32>
    %22 = tpu.matmul %1, %21, %cst_18 {dimension_numbers = #tpu.dot_dimension_numbers<[1], [0], [0], [1], [0, 0, 1, 1], [], []>} : vector<16x128xbf16>, vector<128x128xbf16>, vector<16x128xf32> -> vector<16x128xf32>
    %c2_19 = arith.constant 2 : index
    %c0_20 = arith.constant 0 : index
    %c0_21 = arith.constant 0 : index
    %23 = vector.load %arg6[%c2_19, %c0_20, %c0_21] : memref<6x1x128xf32, #tpu.memory_space<vmem>>, vector<1x1x128xf32>
    %24 = vector.shape_cast %23 : vector<1x1x128xf32> to vector<1x128xf32>
    %25 = vector.broadcast %24 : vector<1x128xf32> to vector<16x128xf32>
    %26 = arith.addf %22, %25 : vector<16x128xf32>
    %27 = arith.truncf %26 : vector<16x128xf32> to vector<16x128xbf16>
    %c32 = arith.constant 32 : index
    %c0_22 = arith.constant 0 : index
    %28 = vector.load %arg12[%c32, %c0_22] : memref<96x128xbf16, #tpu.memory_space<vmem>>, vector<16x128xbf16>
    tpu.vector_store %arg12[%c32, %c0_22], %27 {strides = array<i32>} : memref<96x128xbf16, #tpu.memory_space<vmem>>, vector<16x128xbf16>,
    %c3 = arith.constant 3 : index
    %c0_23 = arith.constant 0 : index
    %c0_24 = arith.constant 0 : index
    %29 = vector.load %arg5[%c3, %c0_23, %c0_24] : memref<6x128x128xbf16, #tpu.memory_space<vmem>>, vector<1x128x128xbf16>
    %30 = vector.shape_cast %29 : vector<1x128x128xbf16> to vector<128x128xbf16>
    %cst_25 = arith.constant dense<0.000000e+00> : vector<16x128xf32>
    %31 = tpu.matmul %1, %30, %cst_25 {dimension_numbers = #tpu.dot_dimension_numbers<[1], [0], [0], [1], [0, 0, 1, 1], [], []>} : vector<16x128xbf16>, vector<128x128xbf16>, vector<16x128xf32> -> vector<16x128xf32>
    %c3_26 = arith.constant 3 : index
    %c0_27 = arith.constant 0 : index
    %c0_28 = arith.constant 0 : index
    %32 = vector.load %arg6[%c3_26, %c0_27, %c0_28] : memref<6x1x128xf32, #tpu.memory_space<vmem>>, vector<1x1x128xf32>
    %33 = vector.shape_cast %32 : vector<1x1x128xf32> to vector<1x128xf32>
    %34 = vector.broadcast %33 : vector<1x128xf32> to vector<16x128xf32>
    %35 = arith.addf %31, %34 : vector<16x128xf32>
    %36 = arith.truncf %35 : vector<16x128xf32> to vector<16x128xbf16>
    %c48 = arith.constant 48 : index
    %c0_29 = arith.constant 0 : index
    %37 = vector.load %arg12[%c48, %c0_29] : memref<96x128xbf16, #tpu.memory_space<vmem>>, vector<16x128xbf16>
    tpu.vector_store %arg12[%c48, %c0_29], %36 {strides = array<i32>} : memref<96x128xbf16, #tpu.memory_space<vmem>>, vector<16x128xbf16>,
    %c4 = arith.constant 4 : index
    %c0_30 = arith.constant 0 : index
    %c0_31 = arith.constant 0 : index
    %38 = vector.load %arg5[%c4, %c0_30, %c0_31] : memref<6x128x128xbf16, #tpu.memory_space<vmem>>, vector<1x128x128xbf16>
    %39 = vector.shape_cast %38 : vector<1x128x128xbf16> to vector<128x128xbf16>
    %cst_32 = arith.constant dense<0.000000e+00> : vector<16x128xf32>
    %40 = tpu.matmul %1, %39, %cst_32 {dimension_numbers = #tpu.dot_dimension_numbers<[1], [0], [0], [1], [0, 0, 1, 1], [], []>} : vector<16x128xbf16>, vector<128x128xbf16>, vector<16x128xf32> -> vector<16x128xf32>
    %c4_33 = arith.constant 4 : index
    %c0_34 = arith.constant 0 : index
    %c0_35 = arith.constant 0 : index
    %41 = vector.load %arg6[%c4_33, %c0_34, %c0_35] : memref<6x1x128xf32, #tpu.memory_space<vmem>>, vector<1x1x128xf32>
    %42 = vector.shape_cast %41 : vector<1x1x128xf32> to vector<1x128xf32>
    %43 = vector.broadcast %42 : vector<1x128xf32> to vector<16x128xf32>
    %44 = arith.addf %40, %43 : vector<16x128xf32>
    %45 = arith.truncf %44 : vector<16x128xf32> to vector<16x128xbf16>
    %c64 = arith.constant 64 : index
    %c0_36 = arith.constant 0 : index
    %46 = vector.load %arg12[%c64, %c0_36] : memref<96x128xbf16, #tpu.memory_space<vmem>>, vector<16x128xbf16>
    tpu.vector_store %arg12[%c64, %c0_36], %45 {strides = array<i32>} : memref<96x128xbf16, #tpu.memory_space<vmem>>, vector<16x128xbf16>,
    %c5 = arith.constant 5 : index
    %c0_37 = arith.constant 0 : index
    %c0_38 = arith.constant 0 : index
    %47 = vector.load %arg5[%c5, %c0_37, %c0_38] : memref<6x128x128xbf16, #tpu.memory_space<vmem>>, vector<1x128x128xbf16>
    %48 = vector.shape_cast %47 : vector<1x128x128xbf16> to vector<128x128xbf16>
    %cst_39 = arith.constant dense<0.000000e+00> : vector<16x128xf32>
    %49 = tpu.matmul %1, %48, %cst_39 {dimension_numbers = #tpu.dot_dimension_numbers<[1], [0], [0], [1], [0, 0, 1, 1], [], []>} : vector<16x128xbf16>, vector<128x128xbf16>, vector<16x128xf32> -> vector<16x128xf32>
    %c5_40 = arith.constant 5 : index
    %c0_41 = arith.constant 0 : index
    %c0_42 = arith.constant 0 : index
    %50 = vector.load %arg6[%c5_40, %c0_41, %c0_42] : memref<6x1x128xf32, #tpu.memory_space<vmem>>, vector<1x1x128xf32>
    %51 = vector.shape_cast %50 : vector<1x1x128xf32> to vector<1x128xf32>
    %52 = vector.broadcast %51 : vector<1x128xf32> to vector<16x128xf32>
    %53 = arith.addf %49, %52 : vector<16x128xf32>
    %54 = arith.truncf %53 : vector<16x128xf32> to vector<16x128xbf16>
    %c80 = arith.constant 80 : index
    %c0_43 = arith.constant 0 : index
    %55 = vector.load %arg12[%c80, %c0_43] : memref<96x128xbf16, #tpu.memory_space<vmem>>, vector<16x128xbf16>
    tpu.vector_store %arg12[%c80, %c0_43], %54 {strides = array<i32>} : memref<96x128xbf16, #tpu.memory_space<vmem>>, vector<16x128xbf16>,
    %c0_44 = arith.constant 0 : index
    %c0_45 = arith.constant 0 : index
    %56 = vector.load %arg2[%c0_44, %c0_45] : memref<12x96xbf16, #tpu.memory_space<vmem>>, vector<12x96xbf16>
    %c0_46 = arith.constant 0 : index
    %c0_47 = arith.constant 0 : index
    %57 = vector.load %arg12[%c0_46, %c0_47] : memref<96x128xbf16, #tpu.memory_space<vmem>>, vector<96x128xbf16>
    %cst_48 = arith.constant dense<0.000000e+00> : vector<12x128xf32>
    %58 = tpu.matmul %56, %57, %cst_48 {dimension_numbers = #tpu.dot_dimension_numbers<[1], [0], [0], [1], [0, 0, 1, 1], [], []>} : vector<12x96xbf16>, vector<96x128xbf16>, vector<12x128xf32> -> vector<12x128xf32>
    %cst_49 = arith.constant 0.000000e+00 : f32
    %59 = vector.broadcast %cst_49 : f32 to vector<12x128xf32>
    %60 = arith.maximumf %58, %59 : vector<12x128xf32>
    %c0_50 = arith.constant 0 : index
    %c0_51 = arith.constant 0 : index
    %61 = vector.load %arg14[%c0_50, %c0_51] : memref<12x128xf32, #tpu.memory_space<vmem>>, vector<12x128xf32>
    tpu.vector_store %arg14[%c0_50, %c0_51], %60 {strides = array<i32>} : memref<12x128xf32, #tpu.memory_space<vmem>>, vector<12x128xf32>,
    %c0_52 = arith.constant 0 : index
    %c0_53 = arith.constant 0 : index
    %62 = vector.load %arg13[%c0_52, %c0_53] : memref<16x128xf32, #tpu.memory_space<vmem>>, vector<16x128xf32>
    tpu.vector_store %arg13[%c0_52, %c0_53], %0 {strides = array<i32>} : memref<16x128xf32, #tpu.memory_space<vmem>>, vector<16x128xf32>,
    %c0_i32 = arith.constant 0 : i32
    %c12_i32 = arith.constant 12 : i32
    %63 = arith.addi %c0_i32, %c12_i32 : i32
    %c1_i32 = arith.constant 1 : i32
    scf.for %arg16 = %c0_i32 to %63 step %c1_i32  : i32 {
      %145 = arith.index_cast %arg16 : i32 to index
      %146 = memref.load %arg0[%145] : memref<12xi32, #tpu.memory_space<smem>>
      %147 = arith.index_cast %146 : i32 to index
      %c0_131 = arith.constant 0 : index
      %148 = vector.load %arg13[%147, %c0_131] : memref<16x128xf32, #tpu.memory_space<vmem>>, vector<1x128xf32>
      %149 = arith.index_cast %arg16 : i32 to index
      %c0_132 = arith.constant 0 : index
      %150 = vector.load %arg14[%149, %c0_132] : memref<12x128xf32, #tpu.memory_space<vmem>>, vector<1x128xf32>
      %151 = arith.addf %148, %150 : vector<1x128xf32>
      %152 = arith.index_cast %146 : i32 to index
      %c0_133 = arith.constant 0 : index
      %153 = vector.load %arg13[%152, %c0_133] : memref<16x128xf32, #tpu.memory_space<vmem>>, vector<1x128xf32>
      tpu.vector_store %arg13[%152, %c0_133], %151 {strides = array<i32>} : memref<16x128xf32, #tpu.memory_space<vmem>>, vector<1x128xf32>,
    }
    %c12_i32_54 = arith.constant 12 : i32
    %c0_55 = arith.constant 0 : index
    %c0_56 = arith.constant 0 : index
    %64 = vector.load %arg13[%c0_55, %c0_56] : memref<16x128xf32, #tpu.memory_space<vmem>>, vector<16x128xf32>
    %65 = arith.truncf %64 : vector<16x128xf32> to vector<16x128xbf16>
    %c0_57 = arith.constant 0 : index
    %c0_58 = arith.constant 0 : index
    %c0_59 = arith.constant 0 : index
    %66 = vector.load %arg7[%c0_57, %c0_58, %c0_59] : memref<6x128x128xbf16, #tpu.memory_space<vmem>>, vector<1x128x128xbf16>
    %67 = vector.shape_cast %66 : vector<1x128x128xbf16> to vector<128x128xbf16>
    %cst_60 = arith.constant dense<0.000000e+00> : vector<16x128xf32>
    %68 = tpu.matmul %65, %67, %cst_60 {dimension_numbers = #tpu.dot_dimension_numbers<[1], [0], [0], [1], [0, 0, 1, 1], [], []>} : vector<16x128xbf16>, vector<128x128xbf16>, vector<16x128xf32> -> vector<16x128xf32>
    %c0_61 = arith.constant 0 : index
    %c0_62 = arith.constant 0 : index
    %c0_63 = arith.constant 0 : index
    %69 = vector.load %arg8[%c0_61, %c0_62, %c0_63] : memref<6x1x128xf32, #tpu.memory_space<vmem>>, vector<1x1x128xf32>
    %70 = vector.shape_cast %69 : vector<1x1x128xf32> to vector<1x128xf32>
    %71 = vector.broadcast %70 : vector<1x128xf32> to vector<16x128xf32>
    %72 = arith.addf %68, %71 : vector<16x128xf32>
    %73 = arith.truncf %72 : vector<16x128xf32> to vector<16x128xbf16>
    %c0_64 = arith.constant 0 : index
    %c0_65 = arith.constant 0 : index
    %74 = vector.load %arg12[%c0_64, %c0_65] : memref<96x128xbf16, #tpu.memory_space<vmem>>, vector<16x128xbf16>
    tpu.vector_store %arg12[%c0_64, %c0_65], %73 {strides = array<i32>} : memref<96x128xbf16, #tpu.memory_space<vmem>>, vector<16x128xbf16>,
    %c1_66 = arith.constant 1 : index
    %c0_67 = arith.constant 0 : index
    %c0_68 = arith.constant 0 : index
    %75 = vector.load %arg7[%c1_66, %c0_67, %c0_68] : memref<6x128x128xbf16, #tpu.memory_space<vmem>>, vector<1x128x128xbf16>
    %76 = vector.shape_cast %75 : vector<1x128x128xbf16> to vector<128x128xbf16>
    %cst_69 = arith.constant dense<0.000000e+00> : vector<16x128xf32>
    %77 = tpu.matmul %65, %76, %cst_69 {dimension_numbers = #tpu.dot_dimension_numbers<[1], [0], [0], [1], [0, 0, 1, 1], [], []>} : vector<16x128xbf16>, vector<128x128xbf16>, vector<16x128xf32> -> vector<16x128xf32>
    %c1_70 = arith.constant 1 : index
    %c0_71 = arith.constant 0 : index
    %c0_72 = arith.constant 0 : index
    %78 = vector.load %arg8[%c1_70, %c0_71, %c0_72] : memref<6x1x128xf32, #tpu.memory_space<vmem>>, vector<1x1x128xf32>
    %79 = vector.shape_cast %78 : vector<1x1x128xf32> to vector<1x128xf32>
    %80 = vector.broadcast %79 : vector<1x128xf32> to vector<16x128xf32>
    %81 = arith.addf %77, %80 : vector<16x128xf32>
    %82 = arith.truncf %81 : vector<16x128xf32> to vector<16x128xbf16>
    %c16_73 = arith.constant 16 : index
    %c0_74 = arith.constant 0 : index
    %83 = vector.load %arg12[%c16_73, %c0_74] : memref<96x128xbf16, #tpu.memory_space<vmem>>, vector<16x128xbf16>
    tpu.vector_store %arg12[%c16_73, %c0_74], %82 {strides = array<i32>} : memref<96x128xbf16, #tpu.memory_space<vmem>>, vector<16x128xbf16>,
    %c2_75 = arith.constant 2 : index
    %c0_76 = arith.constant 0 : index
    %c0_77 = arith.constant 0 : index
    %84 = vector.load %arg7[%c2_75, %c0_76, %c0_77] : memref<6x128x128xbf16, #tpu.memory_space<vmem>>, vector<1x128x128xbf16>
    %85 = vector.shape_cast %84 : vector<1x128x128xbf16> to vector<128x128xbf16>
    %cst_78 = arith.constant dense<0.000000e+00> : vector<16x128xf32>
    %86 = tpu.matmul %65, %85, %cst_78 {dimension_numbers = #tpu.dot_dimension_numbers<[1], [0], [0], [1], [0, 0, 1, 1], [], []>} : vector<16x128xbf16>, vector<128x128xbf16>, vector<16x128xf32> -> vector<16x128xf32>
    %c2_79 = arith.constant 2 : index
    %c0_80 = arith.constant 0 : index
    %c0_81 = arith.constant 0 : index
    %87 = vector.load %arg8[%c2_79, %c0_80, %c0_81] : memref<6x1x128xf32, #tpu.memory_space<vmem>>, vector<1x1x128xf32>
    %88 = vector.shape_cast %87 : vector<1x1x128xf32> to vector<1x128xf32>
    %89 = vector.broadcast %88 : vector<1x128xf32> to vector<16x128xf32>
    %90 = arith.addf %86, %89 : vector<16x128xf32>
    %91 = arith.truncf %90 : vector<16x128xf32> to vector<16x128xbf16>
    %c32_82 = arith.constant 32 : index
    %c0_83 = arith.constant 0 : index
    %92 = vector.load %arg12[%c32_82, %c0_83] : memref<96x128xbf16, #tpu.memory_space<vmem>>, vector<16x128xbf16>
    tpu.vector_store %arg12[%c32_82, %c0_83], %91 {strides = array<i32>} : memref<96x128xbf16, #tpu.memory_space<vmem>>, vector<16x128xbf16>,
    %c3_84 = arith.constant 3 : index
    %c0_85 = arith.constant 0 : index
    %c0_86 = arith.constant 0 : index
    %93 = vector.load %arg7[%c3_84, %c0_85, %c0_86] : memref<6x128x128xbf16, #tpu.memory_space<vmem>>, vector<1x128x128xbf16>
    %94 = vector.shape_cast %93 : vector<1x128x128xbf16> to vector<128x128xbf16>
    %cst_87 = arith.constant dense<0.000000e+00> : vector<16x128xf32>
    %95 = tpu.matmul %65, %94, %cst_87 {dimension_numbers = #tpu.dot_dimension_numbers<[1], [0], [0], [1], [0, 0, 1, 1], [], []>} : vector<16x128xbf16>, vector<128x128xbf16>, vector<16x128xf32> -> vector<16x128xf32>
    %c3_88 = arith.constant 3 : index
    %c0_89 = arith.constant 0 : index
    %c0_90 = arith.constant 0 : index
    %96 = vector.load %arg8[%c3_88, %c0_89, %c0_90] : memref<6x1x128xf32, #tpu.memory_space<vmem>>, vector<1x1x128xf32>
    %97 = vector.shape_cast %96 : vector<1x1x128xf32> to vector<1x128xf32>
    %98 = vector.broadcast %97 : vector<1x128xf32> to vector<16x128xf32>
    %99 = arith.addf %95, %98 : vector<16x128xf32>
    %100 = arith.truncf %99 : vector<16x128xf32> to vector<16x128xbf16>
    %c48_91 = arith.constant 48 : index
    %c0_92 = arith.constant 0 : index
    %101 = vector.load %arg12[%c48_91, %c0_92] : memref<96x128xbf16, #tpu.memory_space<vmem>>, vector<16x128xbf16>
    tpu.vector_store %arg12[%c48_91, %c0_92], %100 {strides = array<i32>} : memref<96x128xbf16, #tpu.memory_space<vmem>>, vector<16x128xbf16>,
    %c4_93 = arith.constant 4 : index
    %c0_94 = arith.constant 0 : index
    %c0_95 = arith.constant 0 : index
    %102 = vector.load %arg7[%c4_93, %c0_94, %c0_95] : memref<6x128x128xbf16, #tpu.memory_space<vmem>>, vector<1x128x128xbf16>
    %103 = vector.shape_cast %102 : vector<1x128x128xbf16> to vector<128x128xbf16>
    %cst_96 = arith.constant dense<0.000000e+00> : vector<16x128xf32>
    %104 = tpu.matmul %65, %103, %cst_96 {dimension_numbers = #tpu.dot_dimension_numbers<[1], [0], [0], [1], [0, 0, 1, 1], [], []>} : vector<16x128xbf16>, vector<128x128xbf16>, vector<16x128xf32> -> vector<16x128xf32>
    %c4_97 = arith.constant 4 : index
    %c0_98 = arith.constant 0 : index
    %c0_99 = arith.constant 0 : index
    %105 = vector.load %arg8[%c4_97, %c0_98, %c0_99] : memref<6x1x128xf32, #tpu.memory_space<vmem>>, vector<1x1x128xf32>
    %106 = vector.shape_cast %105 : vector<1x1x128xf32> to vector<1x128xf32>
    %107 = vector.broadcast %106 : vector<1x128xf32> to vector<16x128xf32>
    %108 = arith.addf %104, %107 : vector<16x128xf32>
    %109 = arith.truncf %108 : vector<16x128xf32> to vector<16x128xbf16>
    %c64_100 = arith.constant 64 : index
    %c0_101 = arith.constant 0 : index
    %110 = vector.load %arg12[%c64_100, %c0_101] : memref<96x128xbf16, #tpu.memory_space<vmem>>, vector<16x128xbf16>
    tpu.vector_store %arg12[%c64_100, %c0_101], %109 {strides = array<i32>} : memref<96x128xbf16, #tpu.memory_space<vmem>>, vector<16x128xbf16>,
    %c5_102 = arith.constant 5 : index
    %c0_103 = arith.constant 0 : index
    %c0_104 = arith.constant 0 : index
    %111 = vector.load %arg7[%c5_102, %c0_103, %c0_104] : memref<6x128x128xbf16, #tpu.memory_space<vmem>>, vector<1x128x128xbf16>
    %112 = vector.shape_cast %111 : vector<1x128x128xbf16> to vector<128x128xbf16>
    %cst_105 = arith.constant dense<0.000000e+00> : vector<16x128xf32>
    %113 = tpu.matmul %65, %112, %cst_105 {dimension_numbers = #tpu.dot_dimension_numbers<[1], [0], [0], [1], [0, 0, 1, 1], [], []>} : vector<16x128xbf16>, vector<128x128xbf16>, vector<16x128xf32> -> vector<16x128xf32>
    %c5_106 = arith.constant 5 : index
    %c0_107 = arith.constant 0 : index
    %c0_108 = arith.constant 0 : index
    %114 = vector.load %arg8[%c5_106, %c0_107, %c0_108] : memref<6x1x128xf32, #tpu.memory_space<vmem>>, vector<1x1x128xf32>
    %115 = vector.shape_cast %114 : vector<1x1x128xf32> to vector<1x128xf32>
    %116 = vector.broadcast %115 : vector<1x128xf32> to vector<16x128xf32>
    %117 = arith.addf %113, %116 : vector<16x128xf32>
    %118 = arith.truncf %117 : vector<16x128xf32> to vector<16x128xbf16>
    %c80_109 = arith.constant 80 : index
    %c0_110 = arith.constant 0 : index
    %119 = vector.load %arg12[%c80_109, %c0_110] : memref<96x128xbf16, #tpu.memory_space<vmem>>, vector<16x128xbf16>
    tpu.vector_store %arg12[%c80_109, %c0_110], %118 {strides = array<i32>} : memref<96x128xbf16, #tpu.memory_space<vmem>>, vector<16x128xbf16>,
    %c0_111 = arith.constant 0 : index
    %c0_112 = arith.constant 0 : index
    %120 = vector.load %arg3[%c0_111, %c0_112] : memref<2x96xbf16, #tpu.memory_space<vmem>>, vector<2x96xbf16>
    %c0_113 = arith.constant 0 : index
    %c0_114 = arith.constant 0 : index
    %121 = vector.load %arg12[%c0_113, %c0_114] : memref<96x128xbf16, #tpu.memory_space<vmem>>, vector<96x128xbf16>
    %cst_115 = arith.constant dense<0.000000e+00> : vector<2x128xf32>
    %122 = tpu.matmul %120, %121, %cst_115 {dimension_numbers = #tpu.dot_dimension_numbers<[1], [0], [0], [1], [0, 0, 1, 1], [], []>} : vector<2x96xbf16>, vector<96x128xbf16>, vector<2x128xf32> -> vector<2x128xf32>
    %cst_116 = arith.constant 0.000000e+00 : f32
    %123 = vector.broadcast %cst_116 : f32 to vector<2x128xf32>
    %124 = arith.maximumf %122, %123 : vector<2x128xf32>
    %c0_i32_117 = arith.constant 0 : i32
    %c2_i32 = arith.constant 2 : i32
    %125 = arith.addi %c0_i32_117, %c2_i32 : i32
    %c1_i32_118 = arith.constant 1 : i32
    scf.for %arg16 = %c0_i32_117 to %125 step %c1_i32_118  : i32 {
      %145 = arith.index_cast %arg16 : i32 to index
      %146 = memref.load %arg1[%145] : memref<2xi32, #tpu.memory_space<smem>>
      %147 = arith.index_cast %146 : i32 to index
      %c0_131 = arith.constant 0 : index
      %148 = vector.load %arg13[%147, %c0_131] : memref<16x128xf32, #tpu.memory_space<vmem>>, vector<1x128xf32>
      %149 = arith.index_cast %arg16 : i32 to index
      %c0_132 = arith.constant 0 : index
      %150 = vector.load %arg15[%149, %c0_132] : memref<2x128xf32, #tpu.memory_space<vmem>>, vector<1x128xf32>
      tpu.vector_store %arg15[%149, %c0_132], %148 {strides = array<i32>} : memref<2x128xf32, #tpu.memory_space<vmem>>, vector<1x128xf32>,
    }
    %c2_i32_119 = arith.constant 2 : i32
    %c0_120 = arith.constant 0 : index
    %c0_121 = arith.constant 0 : index
    %126 = vector.load %arg15[%c0_120, %c0_121] : memref<2x128xf32, #tpu.memory_space<vmem>>, vector<2x128xf32>
    %127 = arith.addf %126, %124 : vector<2x128xf32>
    %128 = arith.mulf %127, %127 : vector<2x128xf32>
    %cst_122 = arith.constant dense<0.000000e+00> : vector<2xf32>
    %129 = vector.multi_reduction <add>, %128, %cst_122 [1] : vector<2x128xf32> to vector<2xf32>
    %130 = vector.shape_cast %129 : vector<2xf32> to vector<2x1xf32>
    %cst_123 = arith.constant 1.000000e-24 : f32
    %131 = vector.broadcast %cst_123 : f32 to vector<2x1xf32>
    %132 = arith.maximumf %130, %131 : vector<2x1xf32>
    %133 = math.rsqrt %132 : vector<2x1xf32>
    %134 = vector.broadcast %133 : vector<2x1xf32> to vector<2x128xf32>
    %135 = arith.mulf %127, %134 : vector<2x128xf32>
    %c0_124 = arith.constant 0 : index
    %c0_125 = arith.constant 0 : index
    %136 = vector.load %arg9[%c0_124, %c0_125] : memref<1x128xf32, #tpu.memory_space<vmem>>, vector<1x128xf32>
    %137 = vector.broadcast %136 : vector<1x128xf32> to vector<2x128xf32>
    %138 = arith.mulf %135, %137 : vector<2x128xf32>
    %cst_126 = arith.constant dense<0.000000e+00> : vector<2xf32>
    %139 = vector.multi_reduction <add>, %138, %cst_126 [1] : vector<2x128xf32> to vector<2xf32>
    %140 = vector.shape_cast %139 : vector<2xf32> to vector<2x1xf32>
    %c0_127 = arith.constant 0 : index
    %c0_128 = arith.constant 0 : index
    %141 = vector.load %arg10[%c0_127, %c0_128] : memref<1x1xf32, #tpu.memory_space<vmem>>, vector<1x1xf32>
    %142 = vector.broadcast %141 : vector<1x1xf32> to vector<2x1xf32>
    %143 = arith.addf %140, %142 : vector<2x1xf32>
    %c0_129 = arith.constant 0 : index
    %c0_130 = arith.constant 0 : index
    %144 = vector.load %arg11[%c0_129, %c0_130] : memref<2x1xf32, #tpu.memory_space<vmem>>, vector<2x1xf32>
    tpu.vector_store %arg11[%c0_129, %c0_130], %143 {strides = array<i32>} : memref<2x1xf32, #tpu.memory_space<vmem>>, vector<2x1xf32>,
    return
  }
}

</mosaic_0001>

<llo_original>
// kernel: tpu_custom_call.1
$region0: #{tpu_custom_call.1}
  #allocation0 [shape = 'u32[]', space=smem, size = 0x4, offset = 0x4, fixed_abs, tag = 'smem constant byte address 0x4 - core index']
  #allocation1 [shape = 'u32[144,128]{1,0:T(1,128)}', space=vmem, size = 0x12000, scoped, tag = 'internal scratch']
  #allocation2 [shape = 'bf16[96,128]{1,0:T(16,128)(2,1)}', space=vmem, size = 0x6000, scoped, tag = 'scratch operand']
  #allocation3 [shape = 'f32[16,128]{1,0:T(8,128)}', space=vmem, size = 0x2000, scoped, tag = 'scratch operand']
  #allocation4 [shape = 'f32[12,128]{1,0:T(8,128)}', space=vmem, size = 0x2000, scoped, tag = 'scratch operand']
  #allocation5 [shape = 'f32[2,128]{1,0:T(2,128)}', space=vmem, size = 0x400, scoped, tag = 'scratch operand']
  #allocation6 [shape = 'f32[1,1]{1,0:T(1,128)S(1)}', space=vmem, size = 0x200, scoped, tag = 'scoped memory for tpu_custom_call.1']
  %s0 = inlined_call_operand.hbm [shape: s32[12], index: 0, kind: input, shape index: {}]
  %s1 = inlined_call_operand.hbm [shape: s32[2], index: 1, kind: input, shape index: {}]
  %s2 = inlined_call_operand.hbm [shape: bf16[12,96], index: 2, kind: input, shape index: {}]
  %s3 = inlined_call_operand.hbm [shape: bf16[2,96], index: 3, kind: input, shape index: {}]
  %s4 = inlined_call_operand.vmem [shape: f32[16,128], index: 4, kind: input, shape index: {}]
  %s5 = inlined_call_operand.hbm [shape: bf16[6,128,128], index: 5, kind: input, shape index: {}]
  %s6 = inlined_call_operand.vmem [shape: f32[6,1,128], index: 6, kind: input, shape index: {}]
  %s7 = inlined_call_operand.hbm [shape: bf16[6,128,128], index: 7, kind: input, shape index: {}]
  %s8 = inlined_call_operand.vmem [shape: f32[6,1,128], index: 8, kind: input, shape index: {}]
  %s9 = inlined_call_operand.vmem [shape: f32[1,128], index: 9, kind: input, shape index: {}]
  %s10 = inlined_call_operand.<no memory space> [shape: f32[1,1], index: 10, kind: input, shape index: {}]
  %s11 = inlined_call_operand.vmem [shape: f32[2,1], index: 11, kind: output, shape index: {}]
  %s12 = sld [smem:[#allocation0]]
  $region92: #{tpu_custom_call.1} parent=0
    _
  %s14 = ssub.s32 1, %s12
  %s15 = scalar_select 0, %s14, %s12
  %v16 = vstv %s10
  %17 = vst [vmem:[#allocation6] sm:$0x1] %v16
  $region1: #{tpu_custom_call.1} parent=0
    #allocation7 [shape = 'u8[512]{0}', space=smem, size = 0x200, scoped, tag = 'input window, operand 0, single buffered']
    #allocation8 [shape = 's32[1]{0}', space=sflag, size = 0x4, scoped, tag = 'scoped memory for tpu_custom_call.1']
    #allocation9 [shape = 's32[1]{0}', space=sflag, size = 0x4, scoped, tag = 'scoped memory for tpu_custom_call.1']
    #allocation10 [shape = 'u8[512]{0}', space=smem, size = 0x200, scoped, tag = 'input window, operand 1, single buffered']
    #allocation11 [shape = 's32[1]{0}', space=sflag, size = 0x4, scoped, tag = 'scoped memory for tpu_custom_call.1']
    #allocation12 [shape = 'u8[4096]{0}', space=vmem, size = 0x1000, scoped, tag = 'input window, operand 2, single buffered']
    #allocation13 [shape = 'u8[512]{0}', space=vmem, size = 0x400, scoped, tag = 'input window, operand 3, single buffered']
    #allocation14 [shape = 's32[1]{0}', space=sflag, size = 0x4, scoped, tag = 'scoped memory for tpu_custom_call.1']
    #allocation15 [shape = 'u8[196608]{0}', space=vmem, size = 0x30000, scoped, tag = 'input window, operand 5, single buffered']
    #allocation16 [shape = 'u8[196608]{0}', space=vmem, size = 0x30000, scoped, tag = 'input window, operand 7, single buffered']
    #allocation17 [shape = 's32[1]{0}', space=sflag, size = 0x4, scoped, tag = 'scoped memory for tpu_custom_call.1']
    %18 = vsyncpa [#allocation9], 0
    %19 = vsyncpa [#allocation11], 0
    %20 = vsyncpa [#allocation8], 0
    %21 = vsyncpa [#allocation14], 0
    %22 = vsyncpa [#allocation17], 0
    // Predicated region
    $region2: #{tpu_custom_call.1} parent=1 // pred_check
      _
    $region3: #{tpu_custom_call.1} parent=1 // pred_check_branch
      %24 = sbr.rel (0) target = $region5
    $region4: #{tpu_custom_call.1} parent=1 // pred_region
      %s26 = ssub.s32 16, 16
      %27 = vsyncadd [#allocation9], %s26
      %30 = dma.hbm_to_smem %s0, 16, [#allocation7], [#allocation9]
    $region5: #{tpu_custom_call.1} parent=1 // pred_fallthru
      _
    // Predicated region
    $region6: #{tpu_custom_call.1} parent=1 // pred_check
      _
    $region7: #{tpu_custom_call.1} parent=1 // pred_check_branch
      %32 = sbr.rel (0) target = $region9
    $region8: #{tpu_custom_call.1} parent=1 // pred_region
      %s34 = ssub.s32 16, 16
      %35 = vsyncadd [#allocation11], %s34
      %38 = dma.hbm_to_smem %s1, 16, [#allocation10], [#allocation11]
    $region9: #{tpu_custom_call.1} parent=1 // pred_fallthru
      _
    // Predicated region
    $region10: #{tpu_custom_call.1} parent=1 // pred_check
      _
    $region11: #{tpu_custom_call.1} parent=1 // pred_check_branch
      %40 = sbr.rel (0) target = $region13
    $region12: #{tpu_custom_call.1} parent=1 // pred_region
      %s42 = ssub.s32 128, 128
      %43 = vsyncadd [#allocation8], %s42
      %s44 = sshll.u32 [#allocation12], 4
      %s45 = int_to_ptr.vmem [resolvable:$true] %s44
      %50 = dma.hbm_to_vmem [thread:$0]  %s2, 128, %s45, [#allocation8], 64, 64, 4
    $region13: #{tpu_custom_call.1} parent=1 // pred_fallthru
      _
    // Predicated region
    $region14: #{tpu_custom_call.1} parent=1 // pred_check
      _
    $region15: #{tpu_custom_call.1} parent=1 // pred_check_branch
      %52 = sbr.rel (0) target = $region17
    $region16: #{tpu_custom_call.1} parent=1 // pred_region
      %s54 = ssub.s32 16, 16
      %55 = vsyncadd [#allocation14], %s54
      %s57 = sshll.u32 [#allocation13], 4
      %s58 = int_to_ptr.vmem [resolvable:$true] %s57
      %60 = dma.hbm_to_vmem [thread:$0]  %s3, 16, %s58, [#allocation14]
    $region17: #{tpu_custom_call.1} parent=1 // pred_fallthru
      _
    // Predicated region
    $region18: #{tpu_custom_call.1} parent=1 // pred_check
      _
    $region19: #{tpu_custom_call.1} parent=1 // pred_check_branch
      %62 = sbr.rel (0) target = $region21
    $region20: #{tpu_custom_call.1} parent=1 // pred_region
      _
    $region21: #{tpu_custom_call.1} parent=1 // pred_fallthru
      _
    // Predicated region
    $region22: #{tpu_custom_call.1} parent=1 // pred_check
      _
    $region23: #{tpu_custom_call.1} parent=1 // pred_check_branch
      %64 = sbr.rel (0) target = $region25
    $region24: #{tpu_custom_call.1} parent=1 // pred_region
      %s66 = ssub.s32 6144, 6144
      %67 = vsyncadd [#allocation14], %s66
      %s68 = sshll.u32 [#allocation15], 4
      %s69 = int_to_ptr.vmem [resolvable:$true] %s68
      %74 = dma.hbm_to_vmem [thread:$0]  %s5, 6144, %s69, [#allocation14], 64, 64, 4
    $region25: #{tpu_custom_call.1} parent=1 // pred_fallthru
      _
    // Predicated region
    $region26: #{tpu_custom_call.1} parent=1 // pred_check
      _
    $region27: #{tpu_custom_call.1} parent=1 // pred_check_branch
      %76 = sbr.rel (0) target = $region29
    $region28: #{tpu_custom_call.1} parent=1 // pred_region
      _
    $region29: #{tpu_custom_call.1} parent=1 // pred_fallthru
      _
    // Predicated region
    $region30: #{tpu_custom_call.1} parent=1 // pred_check
      _
    $region31: #{tpu_custom_call.1} parent=1 // pred_check_branch
      %78 = sbr.rel (0) target = $region33
    $region32: #{tpu_custom_call.1} parent=1 // pred_region
      %s80 = ssub.s32 6144, 6144
      %81 = vsyncadd [#allocation17], %s80
      %s82 = sshll.u32 [#allocation16], 4
      %s83 = int_to_ptr.vmem [resolvable:$true] %s82
      %88 = dma.hbm_to_vmem [thread:$0]  %s7, 6144, %s83, [#allocation17], 64, 64, 4
    $region33: #{tpu_custom_call.1} parent=1 // pred_fallthru
      _
    // Predicated region
    $region34: #{tpu_custom_call.1} parent=1 // pred_check
      _
    $region35: #{tpu_custom_call.1} parent=1 // pred_check_branch
      %90 = sbr.rel (0) target = $region37
    $region36: #{tpu_custom_call.1} parent=1 // pred_region
      _
    $region37: #{tpu_custom_call.1} parent=1 // pred_fallthru
      _
    // Predicated region
    $region38: #{tpu_custom_call.1} parent=1 // pred_check
      _
    $region39: #{tpu_custom_call.1} parent=1 // pred_check_branch
      %92 = sbr.rel (0) target = $region41
    $region40: #{tpu_custom_call.1} parent=1 // pred_region
      _
    $region41: #{tpu_custom_call.1} parent=1 // pred_fallthru
      _
    // Predicated region
    $region42: #{tpu_custom_call.1} parent=1 // pred_check
      _
    $region43: #{tpu_custom_call.1} parent=1 // pred_check_branch
      %94 = sbr.rel (0) target = $region45
    $region44: #{tpu_custom_call.1} parent=1 // pred_region
      _
    $region45: #{tpu_custom_call.1} parent=1 // pred_fallthru
      _
    // Predicated region
    $region46: #{tpu_custom_call.1} parent=1 // pred_check
      _
    $region47: #{tpu_custom_call.1} parent=1 // pred_check_branch
      %96 = sbr.rel (0) target = $region49
    $region48: #{tpu_custom_call.1} parent=1 // pred_region
      %97 = dma.done [#allocation9], 16
    $region49: #{tpu_custom_call.1} parent=1 // pred_fallthru
      _
    // Predicated region
    $region50: #{tpu_custom_call.1} parent=1 // pred_check
      _
    $region51: #{tpu_custom_call.1} parent=1 // pred_check_branch
      %99 = sbr.rel (0) target = $region53
    $region52: #{tpu_custom_call.1} parent=1 // pred_region
      %100 = dma.done [#allocation11], 16
    $region53: #{tpu_custom_call.1} parent=1 // pred_fallthru
      _
    // Predicated region
    $region54: #{tpu_custom_call.1} parent=1 // pred_check
      _
    $region55: #{tpu_custom_call.1} parent=1 // pred_check_branch
      %102 = sbr.rel (0) target = $region57
    $region56: #{tpu_custom_call.1} parent=1 // pred_region
      %103 = dma.done [#allocation8], 128
    $region57: #{tpu_custom_call.1} parent=1 // pred_fallthru
      _
    // Predicated region
    $region58: #{tpu_custom_call.1} parent=1 // pred_check
      _
    $region59: #{tpu_custom_call.1} parent=1 // pred_check_branch
      %105 = sbr.rel (0) target = $region61
    $region60: #{tpu_custom_call.1} parent=1 // pred_region
      %106 = dma.done [#allocation14], 16
    $region61: #{tpu_custom_call.1} parent=1 // pred_fallthru
      _
    // Predicated region
    $region62: #{tpu_custom_call.1} parent=1 // pred_check
      _
    $region63: #{tpu_custom_call.1} parent=1 // pred_check_branch
      %108 = sbr.rel (0) target = $region65
    $region64: #{tpu_custom_call.1} parent=1 // pred_region
      %109 = dma.done [#allocation14], 6144
    $region65: #{tpu_custom_call.1} parent=1 // pred_fallthru
      _
    // Predicated region
    $region66: #{tpu_custom_call.1} parent=1 // pred_check
      _
    $region67: #{tpu_custom_call.1} parent=1 // pred_check_branch
      %111 = sbr.rel (0) target = $region69
    $region68: #{tpu_custom_call.1} parent=1 // pred_region
      %112 = dma.done [#allocation17], 6144
    $region69: #{tpu_custom_call.1} parent=1 // pred_fallthru
      _
    %113 = sfence
    %v115 = vld [vmem:[%s4] sm:$0xff]
    %v116 = vld [vmem:[%s4 + $0x8] sm:$0xff]
    %v117 = vpack.c.bf16 %v116, %v115
    %v118 = vld [vmem:[#allocation15] sm:$0xf]
    %v119 = vld [vmem:[#allocation15 + $0x4] sm:$0xf]
    %v120 = vld [vmem:[#allocation15 + $0x8] sm:$0xf]
    %v121 = vld [vmem:[#allocation15 + $0xc] sm:$0xf]
    %v122 = vld [vmem:[#allocation15 + $0x10] sm:$0xf]
    %v123 = vld [vmem:[#allocation15 + $0x14] sm:$0xf]
    %v124 = vld [vmem:[#allocation15 + $0x18] sm:$0xf]
    %v125 = vld [vmem:[#allocation15 + $0x1c] sm:$0xf]
    %v126 = vld [vmem:[#allocation15 + $0x20] sm:$0xf]
    %v127 = vld [vmem:[#allocation15 + $0x24] sm:$0xf]
    %v128 = vld [vmem:[#allocation15 + $0x28] sm:$0xf]
    %v129 = vld [vmem:[#allocation15 + $0x2c] sm:$0xf]
    %v130 = vld [vmem:[#allocation15 + $0x30] sm:$0xf]
    %v131 = vld [vmem:[#allocation15 + $0x34] sm:$0xf]
    %v132 = vld [vmem:[#allocation15 + $0x38] sm:$0xf]
    %v133 = vld [vmem:[#allocation15 + $0x3c] sm:$0xf]
    %v134 = vld [vmem:[%s6] sm:$0x1]
    %v136 = vlaneseq
    %v137 = vshrl.u32 %v136, 7
    %v138 = vsub.s32 0, %v137
    %v139 = vrot.slane %v134, %v138
    %v157 = vunpack.c.l.b16 %v118
    %v158 = vunpack.c.l.b16 %v119
    %v159 = vunpack.c.l.b16 %v120
    %v160 = vunpack.c.l.b16 %v121
    %v161 = vunpack.c.l.b16 %v122
    %v162 = vunpack.c.l.b16 %v123
    %v163 = vunpack.c.l.b16 %v124
    %v164 = vunpack.c.l.b16 %v125
    %v165 = vunpack.c.l.b16 %v126
    %v166 = vunpack.c.l.b16 %v127
    %v167 = vunpack.c.l.b16 %v128
    %v168 = vunpack.c.l.b16 %v129
    %v169 = vunpack.c.l.b16 %v130
    %v170 = vunpack.c.l.b16 %v131
    %v171 = vunpack.c.l.b16 %v132
    %v172 = vunpack.c.l.b16 %v133
    %v173 = vpack.c.b16 %v158, %v157
    %v174 = vpack.c.b16 %v160, %v159
    %v175 = vpack.c.b16 %v162, %v161
    %v176 = vpack.c.b16 %v164, %v163
    %v177 = vpack.c.b16 %v166, %v165
    %v178 = vpack.c.b16 %v168, %v167
    %v179 = vpack.c.b16 %v170, %v169
    %v180 = vpack.c.b16 %v172, %v171
    %189 = vmatprep.subr.bf16.mxu0 0
    %190 = vmatpush1.bf16.msra.mxu0 %v173
    %191 = vmatprep.subr.bf16.mxu0 0
    %192 = vmatpush1.bf16.msra.mxu0 %v174
    %193 = vmatprep.subr.bf16.mxu0 0
    %194 = vmatpush1.bf16.msra.mxu0 %v175
    %195 = vmatprep.subr.bf16.mxu0 0
    %196 = vmatpush1.bf16.msra.mxu0 %v176
    %197 = vmatprep.subr.bf16.mxu0 0
    %198 = vmatpush1.bf16.msra.mxu0 %v177
    %199 = vmatprep.subr.bf16.mxu0 0
    %200 = vmatpush1.bf16.msra.mxu0 %v178
    %201 = vmatprep.subr.bf16.mxu0 0
    %202 = vmatpush1.bf16.msra.mxu0 %v179
    %203 = vmatprep.subr.bf16.mxu0 0
    %204 = vmatpush1.bf16.msra.mxu0 %v180
    %205 = vmatprep.subr.bf16.mxu0 0
    %206 = vmatpush1.bf16.msra.mxu0 0
    %207 = vmatprep.subr.bf16.mxu0 0
    %208 = vmatpush1.bf16.msra.mxu0 0
    %209 = vmatprep.subr.bf16.mxu0 0
    %210 = vmatpush1.bf16.msra.mxu0 0
    %211 = vmatprep.subr.bf16.mxu0 0
    %212 = vmatpush1.bf16.msra.mxu0 0
    %213 = vmatprep.subr.bf16.mxu0 0
    %214 = vmatpush1.bf16.msra.mxu0 0
    %215 = vmatprep.subr.bf16.mxu0 0
    %216 = vmatpush1.bf16.msra.mxu0 0
    %217 = vmatprep.subr.bf16.mxu0 0
    %218 = vmatpush1.bf16.msra.mxu0 0
    %219 = vmatprep.subr.bf16.mxu0 0
    %220 = vmatpush1.bf16.msra.mxu0 0
    %221 = vmatprep.mubr.bf16.mxu0 0
    %222 = vmatmul.mubr.bf16.gmra.mrb[0].mxu0 %v117
    %v223 = vpop.f32.mrb[0].mxu0
    %v224 = vadd.f32 %v139, %v223
    %v225 = vpop.f32.mrb[0].mxu0
    %v226 = vpop.f32.mrb[0].mxu0
    %v227 = vadd.f32 %v139, %v226
    %v228 = vpop.f32.mrb[0].mxu0
    %229 = vdwg.mxu0
    %v230 = vpack.c.bf16 %v227, %v224
    %231 = vst [vmem:[#allocation2] sm:$0xff] %v230
    %s232 = scalar_lea.vmem [#allocation15], 64
    %v233 = vld [vmem:[%s232] sm:$0xf]
    %v234 = vld [vmem:[%s232 + $0x4] sm:$0xf]
    %v235 = vld [vmem:[%s232 + $0x8] sm:$0xf]
    %v236 = vld [vmem:[%s232 + $0xc] sm:$0xf]
    %v237 = vld [vmem:[%s232 + $0x10] sm:$0xf]
    %v238 = vld [vmem:[%s232 + $0x14] sm:$0xf]
    %v239 = vld [vmem:[%s232 + $0x18] sm:$0xf]
    %v240 = vld [vmem:[%s232 + $0x1c] sm:$0xf]
    %v241 = vld [vmem:[%s232 + $0x20] sm:$0xf]
    %v242 = vld [vmem:[%s232 + $0x24] sm:$0xf]
    %v243 = vld [vmem:[%s232 + $0x28] sm:$0xf]
    %v244 = vld [vmem:[%s232 + $0x2c] sm:$0xf]
    %v245 = vld [vmem:[%s232 + $0x30] sm:$0xf]
    %v246 = vld [vmem:[%s232 + $0x34] sm:$0xf]
    %v247 = vld [vmem:[%s232 + $0x38] sm:$0xf]
    %v248 = vld [vmem:[%s232 + $0x3c] sm:$0xf]
    %s249 = scalar_lea.vmem %s6, 1
    %v250 = vld [vmem:[%s249] sm:$0x1]
    %v252 = vlaneseq
    %v253 = vshrl.u32 %v252, 7
    %v254 = vsub.s32 0, %v253
    %v255 = vrot.slane %v250, %v254
    %v273 = vunpack.c.l.b16 %v233
    %v274 = vunpack.c.l.b16 %v234
    %v275 = vunpack.c.l.b16 %v235
    %v276 = vunpack.c.l.b16 %v236
    %v277 = vunpack.c.l.b16 %v237
    %v278 = vunpack.c.l.b16 %v238
    %v279 = vunpack.c.l.b16 %v239
    %v280 = vunpack.c.l.b16 %v240
    %v281 = vunpack.c.l.b16 %v241
    %v282 = vunpack.c.l.b16 %v242
    %v283 = vunpack.c.l.b16 %v243
    %v284 = vunpack.c.l.b16 %v244
    %v285 = vunpack.c.l.b16 %v245
    %v286 = vunpack.c.l.b16 %v246
    %v287 = vunpack.c.l.b16 %v247
    %v288 = vunpack.c.l.b16 %v248
    %v289 = vpack.c.b16 %v274, %v273
    %v290 = vpack.c.b16 %v276, %v275
    %v291 = vpack.c.b16 %v278, %v277
    %v292 = vpack.c.b16 %v280, %v279
    %v293 = vpack.c.b16 %v282, %v281
    %v294 = vpack.c.b16 %v284, %v283
    %v295 = vpack.c.b16 %v286, %v285
    %v296 = vpack.c.b16 %v288, %v287
    %305 = vmatprep.subr.bf16.mxu0 0
    %306 = vmatpush1.bf16.msra.mxu0 %v289
    %307 = vmatprep.subr.bf16.mxu0 0
    %308 = vmatpush1.bf16.msra.mxu0 %v290
    %309 = vmatprep.subr.bf16.mxu0 0
    %310 = vmatpush1.bf16.msra.mxu0 %v291
    %311 = vmatprep.subr.bf16.mxu0 0
    %312 = vmatpush1.bf16.msra.mxu0 %v292
    %313 = vmatprep.subr.bf16.mxu0 0
    %314 = vmatpush1.bf16.msra.mxu0 %v293
    %315 = vmatprep.subr.bf16.mxu0 0
    %316 = vmatpush1.bf16.msra.mxu0 %v294
    %317 = vmatprep.subr.bf16.mxu0 0
    %318 = vmatpush1.bf16.msra.mxu0 %v295
    %319 = vmatprep.subr.bf16.mxu0 0
    %320 = vmatpush1.bf16.msra.mxu0 %v296
    %321 = vmatprep.subr.bf16.mxu0 0
    %322 = vmatpush1.bf16.msra.mxu0 0
    %323 = vmatprep.subr.bf16.mxu0 0
    %324 = vmatpush1.bf16.msra.mxu0 0
    %325 = vmatprep.subr.bf16.mxu0 0
    %326 = vmatpush1.bf16.msra.mxu0 0
    %327 = vmatprep.subr.bf16.mxu0 0
    %328 = vmatpush1.bf16.msra.mxu0 0
    %329 = vmatprep.subr.bf16.mxu0 0
    %330 = vmatpush1.bf16.msra.mxu0 0
    %331 = vmatprep.subr.bf16.mxu0 0
    %332 = vmatpush1.bf16.msra.mxu0 0
    %333 = vmatprep.subr.bf16.mxu0 0
    %334 = vmatpush1.bf16.msra.mxu0 0
    %335 = vmatprep.subr.bf16.mxu0 0
    %336 = vmatpush1.bf16.msra.mxu0 0
    %337 = vmatprep.mubr.bf16.mxu0 0
    %338 = vmatmul.mubr.bf16.gmra.mrb[0].mxu0 %v117
    %v339 = vpop.f32.mrb[0].mxu0
    %v340 = vadd.f32 %v255, %v339
    %v341 = vpop.f32.mrb[0].mxu0
    %v342 = vpop.f32.mrb[0].mxu0
    %v343 = vadd.f32 %v255, %v342
    %v344 = vpop.f32.mrb[0].mxu0
    %345 = vdwg.mxu0
    %v346 = vpack.c.bf16 %v343, %v340
    %347 = vst [vmem:[#allocation2 + $0x8] sm:$0xff] %v346
    %s348 = scalar_lea.vmem [#allocation15], 128
    %v349 = vld [vmem:[%s348] sm:$0xf]
    %v350 = vld [vmem:[%s348 + $0x4] sm:$0xf]
    %v351 = vld [vmem:[%s348 + $0x8] sm:$0xf]
    %v352 = vld [vmem:[%s348 + $0xc] sm:$0xf]
    %v353 = vld [vmem:[%s348 + $0x10] sm:$0xf]
    %v354 = vld [vmem:[%s348 + $0x14] sm:$0xf]
    %v355 = vld [vmem:[%s348 + $0x18] sm:$0xf]
    %v356 = vld [vmem:[%s348 + $0x1c] sm:$0xf]
    %v357 = vld [vmem:[%s348 + $0x20] sm:$0xf]
    %v358 = vld [vmem:[%s348 + $0x24] sm:$0xf]
    %v359 = vld [vmem:[%s348 + $0x28] sm:$0xf]
    %v360 = vld [vmem:[%s348 + $0x2c] sm:$0xf]
    %v361 = vld [vmem:[%s348 + $0x30] sm:$0xf]
    %v362 = vld [vmem:[%s348 + $0x34] sm:$0xf]
    %v363 = vld [vmem:[%s348 + $0x38] sm:$0xf]
    %v364 = vld [vmem:[%s348 + $0x3c] sm:$0xf]
    %s365 = scalar_lea.vmem %s6, 2
    %v366 = vld [vmem:[%s365] sm:$0x1]
    %v368 = vlaneseq
    %v369 = vshrl.u32 %v368, 7
    %v370 = vsub.s32 0, %v369
    %v371 = vrot.slane %v366, %v370
    %v389 = vunpack.c.l.b16 %v349
    %v390 = vunpack.c.l.b16 %v350
    %v391 = vunpack.c.l.b16 %v351
    %v392 = vunpack.c.l.b16 %v352
    %v393 = vunpack.c.l.b16 %v353
    %v394 = vunpack.c.l.b16 %v354
    %v395 = vunpack.c.l.b16 %v355
    %v396 = vunpack.c.l.b16 %v356
    %v397 = vunpack.c.l.b16 %v357
    %v398 = vunpack.c.l.b16 %v358
    %v399 = vunpack.c.l.b16 %v359
    %v400 = vunpack.c.l.b16 %v360
    %v401 = vunpack.c.l.b16 %v361
    %v402 = vunpack.c.l.b16 %v362
    %v403 = vunpack.c.l.b16 %v363
    %v404 = vunpack.c.l.b16 %v364
    %v405 = vpack.c.b16 %v390, %v389
    %v406 = vpack.c.b16 %v392, %v391
    %v407 = vpack.c.b16 %v394, %v393
    %v408 = vpack.c.b16 %v396, %v395
    %v409 = vpack.c.b16 %v398, %v397
    %v410 = vpack.c.b16 %v400, %v399
    %v411 = vpack.c.b16 %v402, %v401
    %v412 = vpack.c.b16 %v404, %v403
    %421 = vmatprep.subr.bf16.mxu0 0
    %422 = vmatpush1.bf16.msra.mxu0 %v405
    %423 = vmatprep.subr.bf16.mxu0 0
    %424 = vmatpush1.bf16.msra.mxu0 %v406
    %425 = vmatprep.subr.bf16.mxu0 0
    %426 = vmatpush1.bf16.msra.mxu0 %v407
    %427 = vmatprep.subr.bf16.mxu0 0
    %428 = vmatpush1.bf16.msra.mxu0 %v408
    %429 = vmatprep.subr.bf16.mxu0 0
    %430 = vmatpush1.bf16.msra.mxu0 %v409
    %431 = vmatprep.subr.bf16.mxu0 0
    %432 = vmatpush1.bf16.msra.mxu0 %v410
    %433 = vmatprep.subr.bf16.mxu0 0
    %434 = vmatpush1.bf16.msra.mxu0 %v411
    %435 = vmatprep.subr.bf16.mxu0 0
    %436 = vmatpush1.bf16.msra.mxu0 %v412
    %437 = vmatprep.subr.bf16.mxu0 0
    %438 = vmatpush1.bf16.msra.mxu0 0
    %439 = vmatprep.subr.bf16.mxu0 0
    %440 = vmatpush1.bf16.msra.mxu0 0
    %441 = vmatprep.subr.bf16.mxu0 0
    %442 = vmatpush1.bf16.msra.mxu0 0
    %443 = vmatprep.subr.bf16.mxu0 0
    %444 = vmatpush1.bf16.msra.mxu0 0
    %445 = vmatprep.subr.bf16.mxu0 0
    %446 = vmatpush1.bf16.msra.mxu0 0
    %447 = vmatprep.subr.bf16.mxu0 0
    %448 = vmatpush1.bf16.msra.mxu0 0
    %449 = vmatprep.subr.bf16.mxu0 0
    %450 = vmatpush1.bf16.msra.mxu0 0
    %451 = vmatprep.subr.bf16.mxu0 0
    %452 = vmatpush1.bf16.msra.mxu0 0
    %453 = vmatprep.mubr.bf16.mxu0 0
    %454 = vmatmul.mubr.bf16.gmra.mrb[0].mxu0 %v117
    %v455 = vpop.f32.mrb[0].mxu0
    %v456 = vadd.f32 %v371, %v455
    %v457 = vpop.f32.mrb[0].mxu0
    %v458 = vpop.f32.mrb[0].mxu0
    %v459 = vadd.f32 %v371, %v458
    %v460 = vpop.f32.mrb[0].mxu0
    %461 = vdwg.mxu0
    %v462 = vpack.c.bf16 %v459, %v456
    %463 = vst [vmem:[#allocation2 + $0x10] sm:$0xff] %v462
    %s464 = scalar_lea.vmem [#allocation15], 192
    %v465 = vld [vmem:[%s464] sm:$0xf]
    %v466 = vld [vmem:[%s464 + $0x4] sm:$0xf]
    %v467 = vld [vmem:[%s464 + $0x8] sm:$0xf]
    %v468 = vld [vmem:[%s464 + $0xc] sm:$0xf]
    %v469 = vld [vmem:[%s464 + $0x10] sm:$0xf]
    %v470 = vld [vmem:[%s464 + $0x14] sm:$0xf]
    %v471 = vld [vmem:[%s464 + $0x18] sm:$0xf]
    %v472 = vld [vmem:[%s464 + $0x1c] sm:$0xf]
    %v473 = vld [vmem:[%s464 + $0x20] sm:$0xf]
    %v474 = vld [vmem:[%s464 + $0x24] sm:$0xf]
    %v475 = vld [vmem:[%s464 + $0x28] sm:$0xf]
    %v476 = vld [vmem:[%s464 + $0x2c] sm:$0xf]
    %v477 = vld [vmem:[%s464 + $0x30] sm:$0xf]
    %v478 = vld [vmem:[%s464 + $0x34] sm:$0xf]
    %v479 = vld [vmem:[%s464 + $0x38] sm:$0xf]
    %v480 = vld [vmem:[%s464 + $0x3c] sm:$0xf]
    %s481 = scalar_lea.vmem %s6, 3
    %v482 = vld [vmem:[%s481] sm:$0x1]
    %v484 = vlaneseq
    %v485 = vshrl.u32 %v484, 7
    %v486 = vsub.s32 0, %v485
    %v487 = vrot.slane %v482, %v486
    %v505 = vunpack.c.l.b16 %v465
    %v506 = vunpack.c.l.b16 %v466
    %v507 = vunpack.c.l.b16 %v467
    %v508 = vunpack.c.l.b16 %v468
    %v509 = vunpack.c.l.b16 %v469
    %v510 = vunpack.c.l.b16 %v470
    %v511 = vunpack.c.l.b16 %v471
    %v512 = vunpack.c.l.b16 %v472
    %v513 = vunpack.c.l.b16 %v473
    %v514 = vunpack.c.l.b16 %v474
    %v515 = vunpack.c.l.b16 %v475
    %v516 = vunpack.c.l.b16 %v476
    %v517 = vunpack.c.l.b16 %v477
    %v518 = vunpack.c.l.b16 %v478
    %v519 = vunpack.c.l.b16 %v479
    %v520 = vunpack.c.l.b16 %v480
    %v521 = vpack.c.b16 %v506, %v505
    %v522 = vpack.c.b16 %v508, %v507
    %v523 = vpack.c.b16 %v510, %v509
    %v524 = vpack.c.b16 %v512, %v511
    %v525 = vpack.c.b16 %v514, %v513
    %v526 = vpack.c.b16 %v516, %v515
    %v527 = vpack.c.b16 %v518, %v517
    %v528 = vpack.c.b16 %v520, %v519
    %537 = vmatprep.subr.bf16.mxu0 0
    %538 = vmatpush1.bf16.msra.mxu0 %v521
    %539 = vmatprep.subr.bf16.mxu0 0
    %540 = vmatpush1.bf16.msra.mxu0 %v522
    %541 = vmatprep.subr.bf16.mxu0 0
    %542 = vmatpush1.bf16.msra.mxu0 %v523
    %543 = vmatprep.subr.bf16.mxu0 0
    %544 = vmatpush1.bf16.msra.mxu0 %v524
    %545 = vmatprep.subr.bf16.mxu0 0
    %546 = vmatpush1.bf16.msra.mxu0 %v525
    %547 = vmatprep.subr.bf16.mxu0 0
    %548 = vmatpush1.bf16.msra.mxu0 %v526
    %549 = vmatprep.subr.bf16.mxu0 0
    %550 = vmatpush1.bf16.msra.mxu0 %v527
    %551 = vmatprep.subr.bf16.mxu0 0
    %552 = vmatpush1.bf16.msra.mxu0 %v528
    %553 = vmatprep.subr.bf16.mxu0 0
    %554 = vmatpush1.bf16.msra.mxu0 0
    %555 = vmatprep.subr.bf16.mxu0 0
    %556 = vmatpush1.bf16.msra.mxu0 0
    %557 = vmatprep.subr.bf16.mxu0 0
    %558 = vmatpush1.bf16.msra.mxu0 0
    %559 = vmatprep.subr.bf16.mxu0 0
    %560 = vmatpush1.bf16.msra.mxu0 0
    %561 = vmatprep.subr.bf16.mxu0 0
    %562 = vmatpush1.bf16.msra.mxu0 0
    %563 = vmatprep.subr.bf16.mxu0 0
    %564 = vmatpush1.bf16.msra.mxu0 0
    %565 = vmatprep.subr.bf16.mxu0 0
    %566 = vmatpush1.bf16.msra.mxu0 0
    %567 = vmatprep.subr.bf16.mxu0 0
    %568 = vmatpush1.bf16.msra.mxu0 0
    %569 = vmatprep.mubr.bf16.mxu0 0
    %570 = vmatmul.mubr.bf16.gmra.mrb[0].mxu0 %v117
    %v571 = vpop.f32.mrb[0].mxu0
    %v572 = vadd.f32 %v487, %v571
    %v573 = vpop.f32.mrb[0].mxu0
    %v574 = vpop.f32.mrb[0].mxu0
    %v575 = vadd.f32 %v487, %v574
    %v576 = vpop.f32.mrb[0].mxu0
    %577 = vdwg.mxu0
    %v578 = vpack.c.bf16 %v575, %v572
    %579 = vst [vmem:[#allocation2 + $0x18] sm:$0xff] %v578
    %s580 = scalar_lea.vmem [#allocation15], 256
    %v581 = vld [vmem:[%s580] sm:$0xf]
    %v582 = vld [vmem:[%s580 + $0x4] sm:$0xf]
    %v583 = vld [vmem:[%s580 + $0x8] sm:$0xf]
    %v584 = vld [vmem:[%s580 + $0xc] sm:$0xf]
    %v585 = vld [vmem:[%s580 + $0x10] sm:$0xf]
    %v586 = vld [vmem:[%s580 + $0x14] sm:$0xf]
    %v587 = vld [vmem:[%s580 + $0x18] sm:$0xf]
    %v588 = vld [vmem:[%s580 + $0x1c] sm:$0xf]
    %v589 = vld [vmem:[%s580 + $0x20] sm:$0xf]
    %v590 = vld [vmem:[%s580 + $0x24] sm:$0xf]
    %v591 = vld [vmem:[%s580 + $0x28] sm:$0xf]
    %v592 = vld [vmem:[%s580 + $0x2c] sm:$0xf]
    %v593 = vld [vmem:[%s580 + $0x30] sm:$0xf]
    %v594 = vld [vmem:[%s580 + $0x34] sm:$0xf]
    %v595 = vld [vmem:[%s580 + $0x38] sm:$0xf]
    %v596 = vld [vmem:[%s580 + $0x3c] sm:$0xf]
    %s597 = scalar_lea.vmem %s6, 4
    %v598 = vld [vmem:[%s597] sm:$0x1]
    %v600 = vlaneseq
    %v601 = vshrl.u32 %v600, 7
    %v602 = vsub.s32 0, %v601
    %v603 = vrot.slane %v598, %v602
    %v621 = vunpack.c.l.b16 %v581
    %v622 = vunpack.c.l.b16 %v582
    %v623 = vunpack.c.l.b16 %v583
    %v624 = vunpack.c.l.b16 %v584
    %v625 = vunpack.c.l.b16 %v585
    %v626 = vunpack.c.l.b16 %v586
    %v627 = vunpack.c.l.b16 %v587
    %v628 = vunpack.c.l.b16 %v588
    %v629 = vunpack.c.l.b16 %v589
    %v630 = vunpack.c.l.b16 %v590
    %v631 = vunpack.c.l.b16 %v591
    %v632 = vunpack.c.l.b16 %v592
    %v633 = vunpack.c.l.b16 %v593
    %v634 = vunpack.c.l.b16 %v594
    %v635 = vunpack.c.l.b16 %v595
    %v636 = vunpack.c.l.b16 %v596
    %v637 = vpack.c.b16 %v622, %v621
    %v638 = vpack.c.b16 %v624, %v623
    %v639 = vpack.c.b16 %v626, %v625
    %v640 = vpack.c.b16 %v628, %v627
    %v641 = vpack.c.b16 %v630, %v629
    %v642 = vpack.c.b16 %v632, %v631
    %v643 = vpack.c.b16 %v634, %v633
    %v644 = vpack.c.b16 %v636, %v635
    %653 = vmatprep.subr.bf16.mxu0 0
    %654 = vmatpush1.bf16.msra.mxu0 %v637
    %655 = vmatprep.subr.bf16.mxu0 0
    %656 = vmatpush1.bf16.msra.mxu0 %v638
    %657 = vmatprep.subr.bf16.mxu0 0
    %658 = vmatpush1.bf16.msra.mxu0 %v639
    %659 = vmatprep.subr.bf16.mxu0 0
    %660 = vmatpush1.bf16.msra.mxu0 %v640
    %661 = vmatprep.subr.bf16.mxu0 0
    %662 = vmatpush1.bf16.msra.mxu0 %v641
    %663 = vmatprep.subr.bf16.mxu0 0
    %664 = vmatpush1.bf16.msra.mxu0 %v642
    %665 = vmatprep.subr.bf16.mxu0 0
    %666 = vmatpush1.bf16.msra.mxu0 %v643
    %667 = vmatprep.subr.bf16.mxu0 0
    %668 = vmatpush1.bf16.msra.mxu0 %v644
    %669 = vmatprep.subr.bf16.mxu0 0
    %670 = vmatpush1.bf16.msra.mxu0 0
    %671 = vmatprep.subr.bf16.mxu0 0
    %672 = vmatpush1.bf16.msra.mxu0 0
    %673 = vmatprep.subr.bf16.mxu0 0
    %674 = vmatpush1.bf16.msra.mxu0 0
    %675 = vmatprep.subr.bf16.mxu0 0
    %676 = vmatpush1.bf16.msra.mxu0 0
    %677 = vmatprep.subr.bf16.mxu0 0
    %678 = vmatpush1.bf16.msra.mxu0 0
    %679 = vmatprep.subr.bf16.mxu0 0
    %680 = vmatpush1.bf16.msra.mxu0 0
    %681 = vmatprep.subr.bf16.mxu0 0
    %682 = vmatpush1.bf16.msra.mxu0 0
    %683 = vmatprep.subr.bf16.mxu0 0
    %684 = vmatpush1.bf16.msra.mxu0 0
    %685 = vmatprep.mubr.bf16.mxu0 0
    %686 = vmatmul.mubr.bf16.gmra.mrb[0].mxu0 %v117
    %v687 = vpop.f32.mrb[0].mxu0
    %v688 = vadd.f32 %v603, %v687
    %v689 = vpop.f32.mrb[0].mxu0
    %v690 = vpop.f32.mrb[0].mxu0
    %v691 = vadd.f32 %v603, %v690
    %v692 = vpop.f32.mrb[0].mxu0
    %693 = vdwg.mxu0
    %v694 = vpack.c.bf16 %v691, %v688
    %695 = vst [vmem:[#allocation2 + $0x20] sm:$0xff] %v694
    %s696 = scalar_lea.vmem [#allocation15], 320
    %v697 = vld [vmem:[%s696] sm:$0xf]
    %v698 = vld [vmem:[%s696 + $0x4] sm:$0xf]
    %v699 = vld [vmem:[%s696 + $0x8] sm:$0xf]
    %v700 = vld [vmem:[%s696 + $0xc] sm:$0xf]
    %v701 = vld [vmem:[%s696 + $0x10] sm:$0xf]
    %v702 = vld [vmem:[%s696 + $0x14] sm:$0xf]
    %v703 = vld [vmem:[%s696 + $0x18] sm:$0xf]
    %v704 = vld [vmem:[%s696 + $0x1c] sm:$0xf]
    %v705 = vld [vmem:[%s696 + $0x20] sm:$0xf]
    %v706 = vld [vmem:[%s696 + $0x24] sm:$0xf]
    %v707 = vld [vmem:[%s696 + $0x28] sm:$0xf]
    %v708 = vld [vmem:[%s696 + $0x2c] sm:$0xf]
    %v709 = vld [vmem:[%s696 + $0x30] sm:$0xf]
    %v710 = vld [vmem:[%s696 + $0x34] sm:$0xf]
    %v711 = vld [vmem:[%s696 + $0x38] sm:$0xf]
    %v712 = vld [vmem:[%s696 + $0x3c] sm:$0xf]
    %s713 = scalar_lea.vmem %s6, 5
    %v714 = vld [vmem:[%s713] sm:$0x1]
    %v716 = vlaneseq
    %v717 = vshrl.u32 %v716, 7
    %v718 = vsub.s32 0, %v717
    %v719 = vrot.slane %v714, %v718
    %v737 = vunpack.c.l.b16 %v697
    %v738 = vunpack.c.l.b16 %v698
    %v739 = vunpack.c.l.b16 %v699
    %v740 = vunpack.c.l.b16 %v700
    %v741 = vunpack.c.l.b16 %v701
    %v742 = vunpack.c.l.b16 %v702
    %v743 = vunpack.c.l.b16 %v703
    %v744 = vunpack.c.l.b16 %v704
    %v745 = vunpack.c.l.b16 %v705
    %v746 = vunpack.c.l.b16 %v706
    %v747 = vunpack.c.l.b16 %v707
    %v748 = vunpack.c.l.b16 %v708
    %v749 = vunpack.c.l.b16 %v709
    %v750 = vunpack.c.l.b16 %v710
    %v751 = vunpack.c.l.b16 %v711
    %v752 = vunpack.c.l.b16 %v712
    %v753 = vpack.c.b16 %v738, %v737
    %v754 = vpack.c.b16 %v740, %v739
    %v755 = vpack.c.b16 %v742, %v741
    %v756 = vpack.c.b16 %v744, %v743
    %v757 = vpack.c.b16 %v746, %v745
    %v758 = vpack.c.b16 %v748, %v747
    %v759 = vpack.c.b16 %v750, %v749
    %v760 = vpack.c.b16 %v752, %v751
    %769 = vmatprep.subr.bf16.mxu0 0
    %770 = vmatpush1.bf16.msra.mxu0 %v753
    %771 = vmatprep.subr.bf16.mxu0 0
    %772 = vmatpush1.bf16.msra.mxu0 %v754
    %773 = vmatprep.subr.bf16.mxu0 0
    %774 = vmatpush1.bf16.msra.mxu0 %v755
    %775 = vmatprep.subr.bf16.mxu0 0
    %776 = vmatpush1.bf16.msra.mxu0 %v756
    %777 = vmatprep.subr.bf16.mxu0 0
    %778 = vmatpush1.bf16.msra.mxu0 %v757
    %779 = vmatprep.subr.bf16.mxu0 0
    %780 = vmatpush1.bf16.msra.mxu0 %v758
    %781 = vmatprep.subr.bf16.mxu0 0
    %782 = vmatpush1.bf16.msra.mxu0 %v759
    %783 = vmatprep.subr.bf16.mxu0 0
    %784 = vmatpush1.bf16.msra.mxu0 %v760
    %785 = vmatprep.subr.bf16.mxu0 0
    %786 = vmatpush1.bf16.msra.mxu0 0
    %787 = vmatprep.subr.bf16.mxu0 0
    %788 = vmatpush1.bf16.msra.mxu0 0
    %789 = vmatprep.subr.bf16.mxu0 0
    %790 = vmatpush1.bf16.msra.mxu0 0
    %791 = vmatprep.subr.bf16.mxu0 0
    %792 = vmatpush1.bf16.msra.mxu0 0
    %793 = vmatprep.subr.bf16.mxu0 0
    %794 = vmatpush1.bf16.msra.mxu0 0
    %795 = vmatprep.subr.bf16.mxu0 0
    %796 = vmatpush1.bf16.msra.mxu0 0
    %797 = vmatprep.subr.bf16.mxu0 0
    %798 = vmatpush1.bf16.msra.mxu0 0
    %799 = vmatprep.subr.bf16.mxu0 0
    %800 = vmatpush1.bf16.msra.mxu0 0
    %801 = vmatprep.mubr.bf16.mxu0 0
    %802 = vmatmul.mubr.bf16.gmra.mrb[0].mxu0 %v117
    %v803 = vpop.f32.mrb[0].mxu0
    %v804 = vadd.f32 %v719, %v803
    %v805 = vpop.f32.mrb[0].mxu0
    %v806 = vpop.f32.mrb[0].mxu0
    %v807 = vadd.f32 %v719, %v806
    %v808 = vpop.f32.mrb[0].mxu0
    %809 = vdwg.mxu0
    %v810 = vpack.c.bf16 %v807, %v804
    %811 = vst [vmem:[#allocation2 + $0x28] sm:$0xff] %v810
    %v812 = vld [vmem:[#allocation12] sm:$0xf]
    %v813 = vld [vmem:[#allocation12 + $0x4] sm:$0x3]
    %v814 = vld [vmem:[#allocation2] sm:$0xff]
    %v815 = vld [vmem:[#allocation2 + $0x8] sm:$0xff]
    %v816 = vld [vmem:[#allocation2 + $0x10] sm:$0xff]
    %v817 = vld [vmem:[#allocation2 + $0x18] sm:$0xff]
    %v818 = vld [vmem:[#allocation2 + $0x20] sm:$0xff]
    %v819 = vld [vmem:[#allocation2 + $0x28] sm:$0xff]
    %v822 = vunpack.c.l.b16 %v812
    %v823 = vunpack.c.l.b16 %v813
    %v824 = vpack.c.b16 %v823, %v822
    %vm825 = vcmask 785408
    %v827 = vsel %vm825, %v824, 0
    %829 = vmatprep.subr.bf16.mxu0 0
    %830 = vmatpush1.bf16.msra.mxu0 %v814
    %831 = vmatprep.subr.bf16.mxu0 0
    %832 = vmatpush1.bf16.msra.mxu0 %v815
    %833 = vmatprep.subr.bf16.mxu0 0
    %834 = vmatpush1.bf16.msra.mxu0 %v816
    %835 = vmatprep.subr.bf16.mxu0 0
    %836 = vmatpush1.bf16.msra.mxu0 %v817
    %837 = vmatprep.subr.bf16.mxu0 0
    %838 = vmatpush1.bf16.msra.mxu0 %v818
    %839 = vmatprep.subr.bf16.mxu0 0
    %840 = vmatpush1.bf16.msra.mxu0 %v819
    %841 = vmatprep.subr.bf16.mxu0 0
    %842 = vmatpush1.bf16.msra.mxu0 0
    %843 = vmatprep.subr.bf16.mxu0 0
    %844 = vmatpush1.bf16.msra.mxu0 0
    %845 = vmatprep.subr.bf16.mxu0 0
    %846 = vmatpush1.bf16.msra.mxu0 0
    %847 = vmatprep.subr.bf16.mxu0 0
    %848 = vmatpush1.bf16.msra.mxu0 0
    %849 = vmatprep.subr.bf16.mxu0 0
    %850 = vmatpush1.bf16.msra.mxu0 0
    %851 = vmatprep.subr.bf16.mxu0 0
    %852 = vmatpush1.bf16.msra.mxu0 0
    %853 = vmatprep.subr.bf16.mxu0 0
    %854 = vmatpush1.bf16.msra.mxu0 0
    %855 = vmatprep.subr.bf16.mxu0 0
    %856 = vmatpush1.bf16.msra.mxu0 0
    %857 = vmatprep.subr.bf16.mxu0 0
    %858 = vmatpush1.bf16.msra.mxu0 0
    %859 = vmatprep.subr.bf16.mxu0 0
    %860 = vmatpush1.bf16.msra.mxu0 0
    %861 = vmatprep.mubr.bf16.mxu0 0
    %862 = vmatmul.mubr.bf16.gmra.mrb[0].mxu0 %v827
    %v863 = vpop.f32.mrb[0].mxu0
    %v864 = vadd.f32 0.0, %v863
    %v865 = vpop.f32.mrb[0].mxu0
    %v866 = vpop.f32.mrb[0].mxu0
    %v867 = vadd.f32 0.0, %v866
    %v868 = vpop.f32.mrb[0].mxu0
    %869 = vdwg.mxu0
    %v870 = vmax.f32 %v864, 0.0
    %v871 = vmax.f32 %v867, 0.0
    %872 = vst [vmem:[#allocation4] sm:$0xff] %v870
    %873 = vst [vmem:[#allocation4 + $0x8] sm:$0xf] %v871
    %874 = vst [vmem:[#allocation3] sm:$0xff] %v115
    %875 = vst [vmem:[#allocation3 + $0x8] sm:$0xff] %v116
    loop: start=0, step=1, limit=12
    $region70: #{tpu_custom_call.1} parent=1 // loop_pre_header
      _
    $region71: #{tpu_custom_call.1} parent=1 // loop_header
      %s877 = sphi 0, %s881
      %p878 = scmp.ge.s32.totalorder %s877, 12
    $region72: #{tpu_custom_call.1} parent=1 // loop_header_branch
      %880 = sbr.rel (%p878) target = $region76
    $region73: #{tpu_custom_call.1} parent=1 // loop_body
      %s882 = sld [smem:[#allocation7 + %s877]]
      %s883 = scalar_lea.vmem [#allocation3], %s882
      %v884 = vld [vmem:[%s883] sm:$0x1]
      %s885 = scalar_lea.vmem [#allocation4], %s877
      %v886 = vld [vmem:[%s885] sm:$0x1]
      %v887 = vadd.f32 %v884, %v886
      %888 = vst [vmem:[%s883] sm:$0x1] %v887
    $region74: #{tpu_custom_call.1} parent=1 // loop_footer
      %s881 = sadd.s32 1, %s877
    $region75: #{tpu_custom_call.1} parent=1 // loop_footer_branch
      %876 = sbr.rel target = $region71
    $region76: #{tpu_custom_call.1} parent=1 // loop_exit
      _
    %v889 = vld [vmem:[#allocation3] sm:$0xff]
    %v890 = vld [vmem:[#allocation3 + $0x8] sm:$0xff]
    %v891 = vpack.c.bf16 %v890, %v889
    %v892 = vld [vmem:[#allocation16] sm:$0xf]
    %v893 = vld [vmem:[#allocation16 + $0x4] sm:$0xf]
    %v894 = vld [vmem:[#allocation16 + $0x8] sm:$0xf]
    %v895 = vld [vmem:[#allocation16 + $0xc] sm:$0xf]
    %v896 = vld [vmem:[#allocation16 + $0x10] sm:$0xf]
    %v897 = vld [vmem:[#allocation16 + $0x14] sm:$0xf]
    %v898 = vld [vmem:[#allocation16 + $0x18] sm:$0xf]
    %v899 = vld [vmem:[#allocation16 + $0x1c] sm:$0xf]
    %v900 = vld [vmem:[#allocation16 + $0x20] sm:$0xf]
    %v901 = vld [vmem:[#allocation16 + $0x24] sm:$0xf]
    %v902 = vld [vmem:[#allocation16 + $0x28] sm:$0xf]
    %v903 = vld [vmem:[#allocation16 + $0x2c] sm:$0xf]
    %v904 = vld [vmem:[#allocation16 + $0x30] sm:$0xf]
    %v905 = vld [vmem:[#allocation16 + $0x34] sm:$0xf]
    %v906 = vld [vmem:[#allocation16 + $0x38] sm:$0xf]
    %v907 = vld [vmem:[#allocation16 + $0x3c] sm:$0xf]
    %v908 = vld [vmem:[%s8] sm:$0x1]
    %v910 = vlaneseq
    %v911 = vshrl.u32 %v910, 7
    %v912 = vsub.s32 0, %v911
    %v913 = vrot.slane %v908, %v912
    %v931 = vunpack.c.l.b16 %v892
    %v932 = vunpack.c.l.b16 %v893
    %v933 = vunpack.c.l.b16 %v894
    %v934 = vunpack.c.l.b16 %v895
    %v935 = vunpack.c.l.b16 %v896
    %v936 = vunpack.c.l.b16 %v897
    %v937 = vunpack.c.l.b16 %v898
    %v938 = vunpack.c.l.b16 %v899
    %v939 = vunpack.c.l.b16 %v900
    %v940 = vunpack.c.l.b16 %v901
    %v941 = vunpack.c.l.b16 %v902
    %v942 = vunpack.c.l.b16 %v903
    %v943 = vunpack.c.l.b16 %v904
    %v944 = vunpack.c.l.b16 %v905
    %v945 = vunpack.c.l.b16 %v906
    %v946 = vunpack.c.l.b16 %v907
    %v947 = vpack.c.b16 %v932, %v931
    %v948 = vpack.c.b16 %v934, %v933
    %v949 = vpack.c.b16 %v936, %v935
    %v950 = vpack.c.b16 %v938, %v937
    %v951 = vpack.c.b16 %v940, %v939
    %v952 = vpack.c.b16 %v942, %v941
    %v953 = vpack.c.b16 %v944, %v943
    %v954 = vpack.c.b16 %v946, %v945
    %963 = vmatprep.subr.bf16.mxu0 0
    %964 = vmatpush1.bf16.msra.mxu0 %v947
    %965 = vmatprep.subr.bf16.mxu0 0
    %966 = vmatpush1.bf16.msra.mxu0 %v948
    %967 = vmatprep.subr.bf16.mxu0 0
    %968 = vmatpush1.bf16.msra.mxu0 %v949
    %969 = vmatprep.subr.bf16.mxu0 0
    %970 = vmatpush1.bf16.msra.mxu0 %v950
    %971 = vmatprep.subr.bf16.mxu0 0
    %972 = vmatpush1.bf16.msra.mxu0 %v951
    %973 = vmatprep.subr.bf16.mxu0 0
    %974 = vmatpush1.bf16.msra.mxu0 %v952
    %975 = vmatprep.subr.bf16.mxu0 0
    %976 = vmatpush1.bf16.msra.mxu0 %v953
    %977 = vmatprep.subr.bf16.mxu0 0
    %978 = vmatpush1.bf16.msra.mxu0 %v954
    %979 = vmatprep.subr.bf16.mxu0 0
    %980 = vmatpush1.bf16.msra.mxu0 0
    %981 = vmatprep.subr.bf16.mxu0 0
    %982 = vmatpush1.bf16.msra.mxu0 0
    %983 = vmatprep.subr.bf16.mxu0 0
    %984 = vmatpush1.bf16.msra.mxu0 0
    %985 = vmatprep.subr.bf16.mxu0 0
    %986 = vmatpush1.bf16.msra.mxu0 0
    %987 = vmatprep.subr.bf16.mxu0 0
    %988 = vmatpush1.bf16.msra.mxu0 0
    %989 = vmatprep.subr.bf16.mxu0 0
    %990 = vmatpush1.bf16.msra.mxu0 0
    %991 = vmatprep.subr.bf16.mxu0 0
    %992 = vmatpush1.bf16.msra.mxu0 0
    %993 = vmatprep.subr.bf16.mxu0 0
    %994 = vmatpush1.bf16.msra.mxu0 0
    %995 = vmatprep.mubr.bf16.mxu0 0
    %996 = vmatmul.mubr.bf16.gmra.mrb[0].mxu0 %v891
    %v997 = vpop.f32.mrb[0].mxu0
    %v998 = vadd.f32 %v913, %v997
    %v999 = vpop.f32.mrb[0].mxu0
    %v1000 = vpop.f32.mrb[0].mxu0
    %v1001 = vadd.f32 %v913, %v1000
    %v1002 = vpop.f32.mrb[0].mxu0
    %1003 = vdwg.mxu0
    %v1004 = vpack.c.bf16 %v1001, %v998
    %1005 = vst [vmem:[#allocation2] sm:$0xff] %v1004
    %s1006 = scalar_lea.vmem [#allocation16], 64
    %v1007 = vld [vmem:[%s1006] sm:$0xf]
    %v1008 = vld [vmem:[%s1006 + $0x4] sm:$0xf]
    %v1009 = vld [vmem:[%s1006 + $0x8] sm:$0xf]
    %v1010 = vld [vmem:[%s1006 + $0xc] sm:$0xf]
    %v1011 = vld [vmem:[%s1006 + $0x10] sm:$0xf]
    %v1012 = vld [vmem:[%s1006 + $0x14] sm:$0xf]
    %v1013 = vld [vmem:[%s1006 + $0x18] sm:$0xf]
    %v1014 = vld [vmem:[%s1006 + $0x1c] sm:$0xf]
    %v1015 = vld [vmem:[%s1006 + $0x20] sm:$0xf]
    %v1016 = vld [vmem:[%s1006 + $0x24] sm:$0xf]
    %v1017 = vld [vmem:[%s1006 + $0x28] sm:$0xf]
    %v1018 = vld [vmem:[%s1006 + $0x2c] sm:$0xf]
    %v1019 = vld [vmem:[%s1006 + $0x30] sm:$0xf]
    %v1020 = vld [vmem:[%s1006 + $0x34] sm:$0xf]
    %v1021 = vld [vmem:[%s1006 + $0x38] sm:$0xf]
    %v1022 = vld [vmem:[%s1006 + $0x3c] sm:$0xf]
    %s1023 = scalar_lea.vmem %s8, 1
    %v1024 = vld [vmem:[%s1023] sm:$0x1]
    %v1026 = vlaneseq
    %v1027 = vshrl.u32 %v1026, 7
    %v1028 = vsub.s32 0, %v1027
    %v1029 = vrot.slane %v1024, %v1028
    %v1047 = vunpack.c.l.b16 %v1007
    %v1048 = vunpack.c.l.b16 %v1008
    %v1049 = vunpack.c.l.b16 %v1009
    %v1050 = vunpack.c.l.b16 %v1010
    %v1051 = vunpack.c.l.b16 %v1011
    %v1052 = vunpack.c.l.b16 %v1012
    %v1053 = vunpack.c.l.b16 %v1013
    %v1054 = vunpack.c.l.b16 %v1014
    %v1055 = vunpack.c.l.b16 %v1015
    %v1056 = vunpack.c.l.b16 %v1016
    %v1057 = vunpack.c.l.b16 %v1017
    %v1058 = vunpack.c.l.b16 %v1018
    %v1059 = vunpack.c.l.b16 %v1019
    %v1060 = vunpack.c.l.b16 %v1020
    %v1061 = vunpack.c.l.b16 %v1021
    %v1062 = vunpack.c.l.b16 %v1022
    %v1063 = vpack.c.b16 %v1048, %v1047
    %v1064 = vpack.c.b16 %v1050, %v1049
    %v1065 = vpack.c.b16 %v1052, %v1051
    %v1066 = vpack.c.b16 %v1054, %v1053
    %v1067 = vpack.c.b16 %v1056, %v1055
    %v1068 = vpack.c.b16 %v1058, %v1057
    %v1069 = vpack.c.b16 %v1060, %v1059
    %v1070 = vpack.c.b16 %v1062, %v1061
    %1079 = vmatprep.subr.bf16.mxu0 0
    %1080 = vmatpush1.bf16.msra.mxu0 %v1063
    %1081 = vmatprep.subr.bf16.mxu0 0
    %1082 = vmatpush1.bf16.msra.mxu0 %v1064
    %1083 = vmatprep.subr.bf16.mxu0 0
    %1084 = vmatpush1.bf16.msra.mxu0 %v1065
    %1085 = vmatprep.subr.bf16.mxu0 0
    %1086 = vmatpush1.bf16.msra.mxu0 %v1066
    %1087 = vmatprep.subr.bf16.mxu0 0
    %1088 = vmatpush1.bf16.msra.mxu0 %v1067
    %1089 = vmatprep.subr.bf16.mxu0 0
    %1090 = vmatpush1.bf16.msra.mxu0 %v1068
    %1091 = vmatprep.subr.bf16.mxu0 0
    %1092 = vmatpush1.bf16.msra.mxu0 %v1069
    %1093 = vmatprep.subr.bf16.mxu0 0
    %1094 = vmatpush1.bf16.msra.mxu0 %v1070
    %1095 = vmatprep.subr.bf16.mxu0 0
    %1096 = vmatpush1.bf16.msra.mxu0 0
    %1097 = vmatprep.subr.bf16.mxu0 0
    %1098 = vmatpush1.bf16.msra.mxu0 0
    %1099 = vmatprep.subr.bf16.mxu0 0
    %1100 = vmatpush1.bf16.msra.mxu0 0
    %1101 = vmatprep.subr.bf16.mxu0 0
    %1102 = vmatpush1.bf16.msra.mxu0 0
    %1103 = vmatprep.subr.bf16.mxu0 0
    %1104 = vmatpush1.bf16.msra.mxu0 0
    %1105 = vmatprep.subr.bf16.mxu0 0
    %1106 = vmatpush1.bf16.msra.mxu0 0
    %1107 = vmatprep.subr.bf16.mxu0 0
    %1108 = vmatpush1.bf16.msra.mxu0 0
    %1109 = vmatprep.subr.bf16.mxu0 0
    %1110 = vmatpush1.bf16.msra.mxu0 0
    %1111 = vmatprep.mubr.bf16.mxu0 0
    %1112 = vmatmul.mubr.bf16.gmra.mrb[0].mxu0 %v891
    %v1113 = vpop.f32.mrb[0].mxu0
    %v1114 = vadd.f32 %v1029, %v1113
    %v1115 = vpop.f32.mrb[0].mxu0
    %v1116 = vpop.f32.mrb[0].mxu0
    %v1117 = vadd.f32 %v1029, %v1116
    %v1118 = vpop.f32.mrb[0].mxu0
    %1119 = vdwg.mxu0
    %v1120 = vpack.c.bf16 %v1117, %v1114
    %1121 = vst [vmem:[#allocation2 + $0x8] sm:$0xff] %v1120
    %s1122 = scalar_lea.vmem [#allocation16], 128
    %v1123 = vld [vmem:[%s1122] sm:$0xf]
    %v1124 = vld [vmem:[%s1122 + $0x4] sm:$0xf]
    %v1125 = vld [vmem:[%s1122 + $0x8] sm:$0xf]
    %v1126 = vld [vmem:[%s1122 + $0xc] sm:$0xf]
    %v1127 = vld [vmem:[%s1122 + $0x10] sm:$0xf]
    %v1128 = vld [vmem:[%s1122 + $0x14] sm:$0xf]
    %v1129 = vld [vmem:[%s1122 + $0x18] sm:$0xf]
    %v1130 = vld [vmem:[%s1122 + $0x1c] sm:$0xf]
    %v1131 = vld [vmem:[%s1122 + $0x20] sm:$0xf]
    %v1132 = vld [vmem:[%s1122 + $0x24] sm:$0xf]
    %v1133 = vld [vmem:[%s1122 + $0x28] sm:$0xf]
    %v1134 = vld [vmem:[%s1122 + $0x2c] sm:$0xf]
    %v1135 = vld [vmem:[%s1122 + $0x30] sm:$0xf]
    %v1136 = vld [vmem:[%s1122 + $0x34] sm:$0xf]
    %v1137 = vld [vmem:[%s1122 + $0x38] sm:$0xf]
    %v1138 = vld [vmem:[%s1122 + $0x3c] sm:$0xf]
    %s1139 = scalar_lea.vmem %s8, 2
    %v1140 = vld [vmem:[%s1139] sm:$0x1]
    %v1142 = vlaneseq
    %v1143 = vshrl.u32 %v1142, 7
    %v1144 = vsub.s32 0, %v1143
    %v1145 = vrot.slane %v1140, %v1144
    %v1163 = vunpack.c.l.b16 %v1123
    %v1164 = vunpack.c.l.b16 %v1124
    %v1165 = vunpack.c.l.b16 %v1125
    %v1166 = vunpack.c.l.b16 %v1126
    %v1167 = vunpack.c.l.b16 %v1127
    %v1168 = vunpack.c.l.b16 %v1128
    %v1169 = vunpack.c.l.b16 %v1129
    %v1170 = vunpack.c.l.b16 %v1130
    %v1171 = vunpack.c.l.b16 %v1131
    %v1172 = vunpack.c.l.b16 %v1132
    %v1173 = vunpack.c.l.b16 %v1133
    %v1174 = vunpack.c.l.b16 %v1134
    %v1175 = vunpack.c.l.b16 %v1135
    %v1176 = vunpack.c.l.b16 %v1136
    %v1177 = vunpack.c.l.b16 %v1137
    %v1178 = vunpack.c.l.b16 %v1138
    %v1179 = vpack.c.b16 %v1164, %v1163
    %v1180 = vpack.c.b16 %v1166, %v1165
    %v1181 = vpack.c.b16 %v1168, %v1167
    %v1182 = vpack.c.b16 %v1170, %v1169
    %v1183 = vpack.c.b16 %v1172, %v1171
    %v1184 = vpack.c.b16 %v1174, %v1173
    %v1185 = vpack.c.b16 %v1176, %v1175
    %v1186 = vpack.c.b16 %v1178, %v1177
    %1195 = vmatprep.subr.bf16.mxu0 0
    %1196 = vmatpush1.bf16.msra.mxu0 %v1179
    %1197 = vmatprep.subr.bf16.mxu0 0
    %1198 = vmatpush1.bf16.msra.mxu0 %v1180
    %1199 = vmatprep.subr.bf16.mxu0 0
    %1200 = vmatpush1.bf16.msra.mxu0 %v1181
    %1201 = vmatprep.subr.bf16.mxu0 0
    %1202 = vmatpush1.bf16.msra.mxu0 %v1182
    %1203 = vmatprep.subr.bf16.mxu0 0
    %1204 = vmatpush1.bf16.msra.mxu0 %v1183
    %1205 = vmatprep.subr.bf16.mxu0 0
    %1206 = vmatpush1.bf16.msra.mxu0 %v1184
    %1207 = vmatprep.subr.bf16.mxu0 0
    %1208 = vmatpush1.bf16.msra.mxu0 %v1185
    %1209 = vmatprep.subr.bf16.mxu0 0
    %1210 = vmatpush1.bf16.msra.mxu0 %v1186
    %1211 = vmatprep.subr.bf16.mxu0 0
    %1212 = vmatpush1.bf16.msra.mxu0 0
    %1213 = vmatprep.subr.bf16.mxu0 0
    %1214 = vmatpush1.bf16.msra.mxu0 0
    %1215 = vmatprep.subr.bf16.mxu0 0
    %1216 = vmatpush1.bf16.msra.mxu0 0
    %1217 = vmatprep.subr.bf16.mxu0 0
    %1218 = vmatpush1.bf16.msra.mxu0 0
    %1219 = vmatprep.subr.bf16.mxu0 0
    %1220 = vmatpush1.bf16.msra.mxu0 0
    %1221 = vmatprep.subr.bf16.mxu0 0
    %1222 = vmatpush1.bf16.msra.mxu0 0
    %1223 = vmatprep.subr.bf16.mxu0 0
    %1224 = vmatpush1.bf16.msra.mxu0 0
    %1225 = vmatprep.subr.bf16.mxu0 0
    %1226 = vmatpush1.bf16.msra.mxu0 0
    %1227 = vmatprep.mubr.bf16.mxu0 0
    %1228 = vmatmul.mubr.bf16.gmra.mrb[0].mxu0 %v891
    %v1229 = vpop.f32.mrb[0].mxu0
    %v1230 = vadd.f32 %v1145, %v1229
    %v1231 = vpop.f32.mrb[0].mxu0
    %v1232 = vpop.f32.mrb[0].mxu0
    %v1233 = vadd.f32 %v1145, %v1232
    %v1234 = vpop.f32.mrb[0].mxu0
    %1235 = vdwg.mxu0
    %v1236 = vpack.c.bf16 %v1233, %v1230
    %1237 = vst [vmem:[#allocation2 + $0x10] sm:$0xff] %v1236
    %s1238 = scalar_lea.vmem [#allocation16], 192
    %v1239 = vld [vmem:[%s1238] sm:$0xf]
    %v1240 = vld [vmem:[%s1238 + $0x4] sm:$0xf]
    %v1241 = vld [vmem:[%s1238 + $0x8] sm:$0xf]
    %v1242 = vld [vmem:[%s1238 + $0xc] sm:$0xf]
    %v1243 = vld [vmem:[%s1238 + $0x10] sm:$0xf]
    %v1244 = vld [vmem:[%s1238 + $0x14] sm:$0xf]
    %v1245 = vld [vmem:[%s1238 + $0x18] sm:$0xf]
    %v1246 = vld [vmem:[%s1238 + $0x1c] sm:$0xf]
    %v1247 = vld [vmem:[%s1238 + $0x20] sm:$0xf]
    %v1248 = vld [vmem:[%s1238 + $0x24] sm:$0xf]
    %v1249 = vld [vmem:[%s1238 + $0x28] sm:$0xf]
    %v1250 = vld [vmem:[%s1238 + $0x2c] sm:$0xf]
    %v1251 = vld [vmem:[%s1238 + $0x30] sm:$0xf]
    %v1252 = vld [vmem:[%s1238 + $0x34] sm:$0xf]
    %v1253 = vld [vmem:[%s1238 + $0x38] sm:$0xf]
    %v1254 = vld [vmem:[%s1238 + $0x3c] sm:$0xf]
    %s1255 = scalar_lea.vmem %s8, 3
    %v1256 = vld [vmem:[%s1255] sm:$0x1]
    %v1258 = vlaneseq
    %v1259 = vshrl.u32 %v1258, 7
    %v1260 = vsub.s32 0, %v1259
    %v1261 = vrot.slane %v1256, %v1260
    %v1279 = vunpack.c.l.b16 %v1239
    %v1280 = vunpack.c.l.b16 %v1240
    %v1281 = vunpack.c.l.b16 %v1241
    %v1282 = vunpack.c.l.b16 %v1242
    %v1283 = vunpack.c.l.b16 %v1243
    %v1284 = vunpack.c.l.b16 %v1244
    %v1285 = vunpack.c.l.b16 %v1245
    %v1286 = vunpack.c.l.b16 %v1246
    %v1287 = vunpack.c.l.b16 %v1247
    %v1288 = vunpack.c.l.b16 %v1248
    %v1289 = vunpack.c.l.b16 %v1249
    %v1290 = vunpack.c.l.b16 %v1250
    %v1291 = vunpack.c.l.b16 %v1251
    %v1292 = vunpack.c.l.b16 %v1252
    %v1293 = vunpack.c.l.b16 %v1253
    %v1294 = vunpack.c.l.b16 %v1254
    %v1295 = vpack.c.b16 %v1280, %v1279
    %v1296 = vpack.c.b16 %v1282, %v1281
    %v1297 = vpack.c.b16 %v1284, %v1283
    %v1298 = vpack.c.b16 %v1286, %v1285
    %v1299 = vpack.c.b16 %v1288, %v1287
    %v1300 = vpack.c.b16 %v1290, %v1289
    %v1301 = vpack.c.b16 %v1292, %v1291
    %v1302 = vpack.c.b16 %v1294, %v1293
    %1311 = vmatprep.subr.bf16.mxu0 0
    %1312 = vmatpush1.bf16.msra.mxu0 %v1295
    %1313 = vmatprep.subr.bf16.mxu0 0
    %1314 = vmatpush1.bf16.msra.mxu0 %v1296
    %1315 = vmatprep.subr.bf16.mxu0 0
    %1316 = vmatpush1.bf16.msra.mxu0 %v1297
    %1317 = vmatprep.subr.bf16.mxu0 0
    %1318 = vmatpush1.bf16.msra.mxu0 %v1298
    %1319 = vmatprep.subr.bf16.mxu0 0
    %1320 = vmatpush1.bf16.msra.mxu0 %v1299
    %1321 = vmatprep.subr.bf16.mxu0 0
    %1322 = vmatpush1.bf16.msra.mxu0 %v1300
    %1323 = vmatprep.subr.bf16.mxu0 0
    %1324 = vmatpush1.bf16.msra.mxu0 %v1301
    %1325 = vmatprep.subr.bf16.mxu0 0
    %1326 = vmatpush1.bf16.msra.mxu0 %v1302
    %1327 = vmatprep.subr.bf16.mxu0 0
    %1328 = vmatpush1.bf16.msra.mxu0 0
    %1329 = vmatprep.subr.bf16.mxu0 0
    %1330 = vmatpush1.bf16.msra.mxu0 0
    %1331 = vmatprep.subr.bf16.mxu0 0
    %1332 = vmatpush1.bf16.msra.mxu0 0
    %1333 = vmatprep.subr.bf16.mxu0 0
    %1334 = vmatpush1.bf16.msra.mxu0 0
    %1335 = vmatprep.subr.bf16.mxu0 0
    %1336 = vmatpush1.bf16.msra.mxu0 0
    %1337 = vmatprep.subr.bf16.mxu0 0
    %1338 = vmatpush1.bf16.msra.mxu0 0
    %1339 = vmatprep.subr.bf16.mxu0 0
    %1340 = vmatpush1.bf16.msra.mxu0 0
    %1341 = vmatprep.subr.bf16.mxu0 0
    %1342 = vmatpush1.bf16.msra.mxu0 0
    %1343 = vmatprep.mubr.bf16.mxu0 0
    %1344 = vmatmul.mubr.bf16.gmra.mrb[0].mxu0 %v891
    %v1345 = vpop.f32.mrb[0].mxu0
    %v1346 = vadd.f32 %v1261, %v1345
    %v1347 = vpop.f32.mrb[0].mxu0
    %v1348 = vpop.f32.mrb[0].mxu0
    %v1349 = vadd.f32 %v1261, %v1348
    %v1350 = vpop.f32.mrb[0].mxu0
    %1351 = vdwg.mxu0
    %v1352 = vpack.c.bf16 %v1349, %v1346
    %1353 = vst [vmem:[#allocation2 + $0x18] sm:$0xff] %v1352
    %s1354 = scalar_lea.vmem [#allocation16], 256
    %v1355 = vld [vmem:[%s1354] sm:$0xf]
    %v1356 = vld [vmem:[%s1354 + $0x4] sm:$0xf]
    %v1357 = vld [vmem:[%s1354 + $0x8] sm:$0xf]
    %v1358 = vld [vmem:[%s1354 + $0xc] sm:$0xf]
    %v1359 = vld [vmem:[%s1354 + $0x10] sm:$0xf]
    %v1360 = vld [vmem:[%s1354 + $0x14] sm:$0xf]
    %v1361 = vld [vmem:[%s1354 + $0x18] sm:$0xf]
    %v1362 = vld [vmem:[%s1354 + $0x1c] sm:$0xf]
    %v1363 = vld [vmem:[%s1354 + $0x20] sm:$0xf]
    %v1364 = vld [vmem:[%s1354 + $0x24] sm:$0xf]
    %v1365 = vld [vmem:[%s1354 + $0x28] sm:$0xf]
    %v1366 = vld [vmem:[%s1354 + $0x2c] sm:$0xf]
    %v1367 = vld [vmem:[%s1354 + $0x30] sm:$0xf]
    %v1368 = vld [vmem:[%s1354 + $0x34] sm:$0xf]
    %v1369 = vld [vmem:[%s1354 + $0x38] sm:$0xf]
    %v1370 = vld [vmem:[%s1354 + $0x3c] sm:$0xf]
    %s1371 = scalar_lea.vmem %s8, 4
    %v1372 = vld [vmem:[%s1371] sm:$0x1]
    %v1374 = vlaneseq
    %v1375 = vshrl.u32 %v1374, 7
    %v1376 = vsub.s32 0, %v1375
    %v1377 = vrot.slane %v1372, %v1376
    %v1395 = vunpack.c.l.b16 %v1355
    %v1396 = vunpack.c.l.b16 %v1356
    %v1397 = vunpack.c.l.b16 %v1357
    %v1398 = vunpack.c.l.b16 %v1358
    %v1399 = vunpack.c.l.b16 %v1359
    %v1400 = vunpack.c.l.b16 %v1360
    %v1401 = vunpack.c.l.b16 %v1361
    %v1402 = vunpack.c.l.b16 %v1362
    %v1403 = vunpack.c.l.b16 %v1363
    %v1404 = vunpack.c.l.b16 %v1364
    %v1405 = vunpack.c.l.b16 %v1365
    %v1406 = vunpack.c.l.b16 %v1366
    %v1407 = vunpack.c.l.b16 %v1367
    %v1408 = vunpack.c.l.b16 %v1368
    %v1409 = vunpack.c.l.b16 %v1369
    %v1410 = vunpack.c.l.b16 %v1370
    %v1411 = vpack.c.b16 %v1396, %v1395
    %v1412 = vpack.c.b16 %v1398, %v1397
    %v1413 = vpack.c.b16 %v1400, %v1399
    %v1414 = vpack.c.b16 %v1402, %v1401
    %v1415 = vpack.c.b16 %v1404, %v1403
    %v1416 = vpack.c.b16 %v1406, %v1405
    %v1417 = vpack.c.b16 %v1408, %v1407
    %v1418 = vpack.c.b16 %v1410, %v1409
    %1427 = vmatprep.subr.bf16.mxu0 0
    %1428 = vmatpush1.bf16.msra.mxu0 %v1411
    %1429 = vmatprep.subr.bf16.mxu0 0
    %1430 = vmatpush1.bf16.msra.mxu0 %v1412
    %1431 = vmatprep.subr.bf16.mxu0 0
    %1432 = vmatpush1.bf16.msra.mxu0 %v1413
    %1433 = vmatprep.subr.bf16.mxu0 0
    %1434 = vmatpush1.bf16.msra.mxu0 %v1414
    %1435 = vmatprep.subr.bf16.mxu0 0
    %1436 = vmatpush1.bf16.msra.mxu0 %v1415
    %1437 = vmatprep.subr.bf16.mxu0 0
    %1438 = vmatpush1.bf16.msra.mxu0 %v1416
    %1439 = vmatprep.subr.bf16.mxu0 0
    %1440 = vmatpush1.bf16.msra.mxu0 %v1417
    %1441 = vmatprep.subr.bf16.mxu0 0
    %1442 = vmatpush1.bf16.msra.mxu0 %v1418
    %1443 = vmatprep.subr.bf16.mxu0 0
    %1444 = vmatpush1.bf16.msra.mxu0 0
    %1445 = vmatprep.subr.bf16.mxu0 0
    %1446 = vmatpush1.bf16.msra.mxu0 0
    %1447 = vmatprep.subr.bf16.mxu0 0
    %1448 = vmatpush1.bf16.msra.mxu0 0
    %1449 = vmatprep.subr.bf16.mxu0 0
    %1450 = vmatpush1.bf16.msra.mxu0 0
    %1451 = vmatprep.subr.bf16.mxu0 0
    %1452 = vmatpush1.bf16.msra.mxu0 0
    %1453 = vmatprep.subr.bf16.mxu0 0
    %1454 = vmatpush1.bf16.msra.mxu0 0
    %1455 = vmatprep.subr.bf16.mxu0 0
    %1456 = vmatpush1.bf16.msra.mxu0 0
    %1457 = vmatprep.subr.bf16.mxu0 0
    %1458 = vmatpush1.bf16.msra.mxu0 0
    %1459 = vmatprep.mubr.bf16.mxu0 0
    %1460 = vmatmul.mubr.bf16.gmra.mrb[0].mxu0 %v891
    %v1461 = vpop.f32.mrb[0].mxu0
    %v1462 = vadd.f32 %v1377, %v1461
    %v1463 = vpop.f32.mrb[0].mxu0
    %v1464 = vpop.f32.mrb[0].mxu0
    %v1465 = vadd.f32 %v1377, %v1464
    %v1466 = vpop.f32.mrb[0].mxu0
    %1467 = vdwg.mxu0
    %v1468 = vpack.c.bf16 %v1465, %v1462
    %1469 = vst [vmem:[#allocation2 + $0x20] sm:$0xff] %v1468
    %s1470 = scalar_lea.vmem [#allocation16], 320
    %v1471 = vld [vmem:[%s1470] sm:$0xf]
    %v1472 = vld [vmem:[%s1470 + $0x4] sm:$0xf]
    %v1473 = vld [vmem:[%s1470 + $0x8] sm:$0xf]
    %v1474 = vld [vmem:[%s1470 + $0xc] sm:$0xf]
    %v1475 = vld [vmem:[%s1470 + $0x10] sm:$0xf]
    %v1476 = vld [vmem:[%s1470 + $0x14] sm:$0xf]
    %v1477 = vld [vmem:[%s1470 + $0x18] sm:$0xf]
    %v1478 = vld [vmem:[%s1470 + $0x1c] sm:$0xf]
    %v1479 = vld [vmem:[%s1470 + $0x20] sm:$0xf]
    %v1480 = vld [vmem:[%s1470 + $0x24] sm:$0xf]
    %v1481 = vld [vmem:[%s1470 + $0x28] sm:$0xf]
    %v1482 = vld [vmem:[%s1470 + $0x2c] sm:$0xf]
    %v1483 = vld [vmem:[%s1470 + $0x30] sm:$0xf]
    %v1484 = vld [vmem:[%s1470 + $0x34] sm:$0xf]
    %v1485 = vld [vmem:[%s1470 + $0x38] sm:$0xf]
    %v1486 = vld [vmem:[%s1470 + $0x3c] sm:$0xf]
    %s1487 = scalar_lea.vmem %s8, 5
    %v1488 = vld [vmem:[%s1487] sm:$0x1]
    %v1490 = vlaneseq
    %v1491 = vshrl.u32 %v1490, 7
    %v1492 = vsub.s32 0, %v1491
    %v1493 = vrot.slane %v1488, %v1492
    %v1511 = vunpack.c.l.b16 %v1471
    %v1512 = vunpack.c.l.b16 %v1472
    %v1513 = vunpack.c.l.b16 %v1473
    %v1514 = vunpack.c.l.b16 %v1474
    %v1515 = vunpack.c.l.b16 %v1475
    %v1516 = vunpack.c.l.b16 %v1476
    %v1517 = vunpack.c.l.b16 %v1477
    %v1518 = vunpack.c.l.b16 %v1478
    %v1519 = vunpack.c.l.b16 %v1479
    %v1520 = vunpack.c.l.b16 %v1480
    %v1521 = vunpack.c.l.b16 %v1481
    %v1522 = vunpack.c.l.b16 %v1482
    %v1523 = vunpack.c.l.b16 %v1483
    %v1524 = vunpack.c.l.b16 %v1484
    %v1525 = vunpack.c.l.b16 %v1485
    %v1526 = vunpack.c.l.b16 %v1486
    %v1527 = vpack.c.b16 %v1512, %v1511
    %v1528 = vpack.c.b16 %v1514, %v1513
    %v1529 = vpack.c.b16 %v1516, %v1515
    %v1530 = vpack.c.b16 %v1518, %v1517
    %v1531 = vpack.c.b16 %v1520, %v1519
    %v1532 = vpack.c.b16 %v1522, %v1521
    %v1533 = vpack.c.b16 %v1524, %v1523
    %v1534 = vpack.c.b16 %v1526, %v1525
    %1543 = vmatprep.subr.bf16.mxu0 0
    %1544 = vmatpush1.bf16.msra.mxu0 %v1527
    %1545 = vmatprep.subr.bf16.mxu0 0
    %1546 = vmatpush1.bf16.msra.mxu0 %v1528
    %1547 = vmatprep.subr.bf16.mxu0 0
    %1548 = vmatpush1.bf16.msra.mxu0 %v1529
    %1549 = vmatprep.subr.bf16.mxu0 0
    %1550 = vmatpush1.bf16.msra.mxu0 %v1530
    %1551 = vmatprep.subr.bf16.mxu0 0
    %1552 = vmatpush1.bf16.msra.mxu0 %v1531
    %1553 = vmatprep.subr.bf16.mxu0 0
    %1554 = vmatpush1.bf16.msra.mxu0 %v1532
    %1555 = vmatprep.subr.bf16.mxu0 0
    %1556 = vmatpush1.bf16.msra.mxu0 %v1533
    %1557 = vmatprep.subr.bf16.mxu0 0
    %1558 = vmatpush1.bf16.msra.mxu0 %v1534
    %1559 = vmatprep.subr.bf16.mxu0 0
    %1560 = vmatpush1.bf16.msra.mxu0 0
    %1561 = vmatprep.subr.bf16.mxu0 0
    %1562 = vmatpush1.bf16.msra.mxu0 0
    %1563 = vmatprep.subr.bf16.mxu0 0
    %1564 = vmatpush1.bf16.msra.mxu0 0
    %1565 = vmatprep.subr.bf16.mxu0 0
    %1566 = vmatpush1.bf16.msra.mxu0 0
    %1567 = vmatprep.subr.bf16.mxu0 0
    %1568 = vmatpush1.bf16.msra.mxu0 0
    %1569 = vmatprep.subr.bf16.mxu0 0
    %1570 = vmatpush1.bf16.msra.mxu0 0
    %1571 = vmatprep.subr.bf16.mxu0 0
    %1572 = vmatpush1.bf16.msra.mxu0 0
    %1573 = vmatprep.subr.bf16.mxu0 0
    %1574 = vmatpush1.bf16.msra.mxu0 0
    %1575 = vmatprep.mubr.bf16.mxu0 0
    %1576 = vmatmul.mubr.bf16.gmra.mrb[0].mxu0 %v891
    %v1577 = vpop.f32.mrb[0].mxu0
    %v1578 = vadd.f32 %v1493, %v1577
    %v1579 = vpop.f32.mrb[0].mxu0
    %v1580 = vpop.f32.mrb[0].mxu0
    %v1581 = vadd.f32 %v1493, %v1580
    %v1582 = vpop.f32.mrb[0].mxu0
    %1583 = vdwg.mxu0
    %v1584 = vpack.c.bf16 %v1581, %v1578
    %1585 = vst [vmem:[#allocation2 + $0x28] sm:$0xff] %v1584
    %v1586 = vld [vmem:[#allocation13] sm:$0x1]
    %v1587 = vld [vmem:[#allocation2] sm:$0xff]
    %v1588 = vld [vmem:[#allocation2 + $0x8] sm:$0xff]
    %v1589 = vld [vmem:[#allocation2 + $0x10] sm:$0xff]
    %v1590 = vld [vmem:[#allocation2 + $0x18] sm:$0xff]
    %v1591 = vld [vmem:[#allocation2 + $0x20] sm:$0xff]
    %v1592 = vld [vmem:[#allocation2 + $0x28] sm:$0xff]
    %v1594 = vsel %vm825, %v1586, 0
    %1596 = vmatprep.subr.bf16.mxu0 0
    %1597 = vmatpush1.bf16.msra.mxu0 %v1587
    %1598 = vmatprep.subr.bf16.mxu0 0
    %1599 = vmatpush1.bf16.msra.mxu0 %v1588
    %1600 = vmatprep.subr.bf16.mxu0 0
    %1601 = vmatpush1.bf16.msra.mxu0 %v1589
    %1602 = vmatprep.subr.bf16.mxu0 0
    %1603 = vmatpush1.bf16.msra.mxu0 %v1590
    %1604 = vmatprep.subr.bf16.mxu0 0
    %1605 = vmatpush1.bf16.msra.mxu0 %v1591
    %1606 = vmatprep.subr.bf16.mxu0 0
    %1607 = vmatpush1.bf16.msra.mxu0 %v1592
    %1608 = vmatprep.subr.bf16.mxu0 0
    %1609 = vmatpush1.bf16.msra.mxu0 0
    %1610 = vmatprep.subr.bf16.mxu0 0
    %1611 = vmatpush1.bf16.msra.mxu0 0
    %1612 = vmatprep.subr.bf16.mxu0 0
    %1613 = vmatpush1.bf16.msra.mxu0 0
    %1614 = vmatprep.subr.bf16.mxu0 0
    %1615 = vmatpush1.bf16.msra.mxu0 0
    %1616 = vmatprep.subr.bf16.mxu0 0
    %1617 = vmatpush1.bf16.msra.mxu0 0
    %1618 = vmatprep.subr.bf16.mxu0 0
    %1619 = vmatpush1.bf16.msra.mxu0 0
    %1620 = vmatprep.subr.bf16.mxu0 0
    %1621 = vmatpush1.bf16.msra.mxu0 0
    %1622 = vmatprep.subr.bf16.mxu0 0
    %1623 = vmatpush1.bf16.msra.mxu0 0
    %1624 = vmatprep.subr.bf16.mxu0 0
    %1625 = vmatpush1.bf16.msra.mxu0 0
    %1626 = vmatprep.subr.bf16.mxu0 0
    %1627 = vmatpush1.bf16.msra.mxu0 0
    %1628 = vmatprep.mubr.bf16.mxu0 0
    %1629 = vmatmul.mubr.bf16.gmra.mrb[0].mxu0 %v1594
    %v1630 = vpop.f32.mrb[0].mxu0
    %v1631 = vadd.f32 0.0, %v1630
    %v1632 = vpop.f32.mrb[0].mxu0
    %v1633 = vpop.f32.mrb[0].mxu0
    %v1634 = vpop.f32.mrb[0].mxu0
    %1635 = vdwg.mxu0
    %v1636 = vmax.f32 %v1631, 0.0
    loop: start=0, step=1, limit=2
    $region77: #{tpu_custom_call.1} parent=1 // loop_pre_header
      _
    $region78: #{tpu_custom_call.1} parent=1 // loop_header
      %s1638 = sphi 0, %s1642
      %p1639 = scmp.ge.s32.totalorder %s1638, 2
    $region79: #{tpu_custom_call.1} parent=1 // loop_header_branch
      %1641 = sbr.rel (%p1639) target = $region83
    $region80: #{tpu_custom_call.1} parent=1 // loop_body
      %s1643 = sld [smem:[#allocation10 + %s1638]]
      %s1644 = scalar_lea.vmem [#allocation3], %s1643
      %v1645 = vld [vmem:[%s1644] sm:$0x1]
      %s1646 = scalar_lea.vmem [#allocation5], %s1638
      %1647 = vst [vmem:[%s1646] sm:$0x1] %v1645
    $region81: #{tpu_custom_call.1} parent=1 // loop_footer
      %s1642 = sadd.s32 1, %s1638
    $region82: #{tpu_custom_call.1} parent=1 // loop_footer_branch
      %1637 = sbr.rel target = $region78
    $region83: #{tpu_custom_call.1} parent=1 // loop_exit
      _
    %v1648 = vld [vmem:[#allocation5] sm:$0x3]
    %v1649 = vadd.f32 %v1648, %v1636
    %v1650 = vmul.f32 %v1649, %v1649
    %vm1651 = vcmask 1041408
    %v1652 = vsel %vm1651, %v1650, 0.0
    %1653 = vadd.xlane.f32.xlu0 %v1652
    %v1654 = vpop.xlane.xlu0 %1653
    %v1655 = vmax.f32 %v1654, 1e-24
    %v1656 = vrsqrt.pop %v1655
    %v1657 = vmul.f32 %v1649, %v1656
    %v1658 = vld [vmem:[%s9] sm:$0x1]
    %v1660 = vlaneseq
    %v1661 = vshrl.u32 %v1660, 7
    %v1662 = vsub.s32 0, %v1661
    %v1663 = vrot.slane %v1658, %v1662
    %v1665 = vmul.f32 %v1657, %v1663
    %v1666 = vsel %vm1651, %v1665, 0.0
    %1667 = vadd.xlane.f32.xlu0 %v1666
    %v1668 = vpop.xlane.xlu0 %1667
    %v1669 = vld [vmem:[#allocation6] sm:$0x1]
    %v1671 = vlaneseq
    %v1672 = vshrl.u32 %v1671, 7
    %v1673 = vsub.s32 0, %v1672
    %v1674 = vrot.slane %v1669, %v1673
    %v1676 = vadd.f32 %v1668, %v1674
    %vm1677 = vcmask 1024
    %1678 = vst.msk [vmem:[%s11] sm:$0x3] %vm1677, %v1676
    // Predicated region
    $region84: #{tpu_custom_call.1} parent=1 // pred_check
      _
    $region85: #{tpu_custom_call.1} parent=1 // pred_check_branch
      %1680 = sbr.rel (0) target = $region87
    $region86: #{tpu_custom_call.1} parent=1 // pred_region
      _
    $region87: #{tpu_custom_call.1} parent=1 // pred_fallthru
      _
    // Predicated region
    $region88: #{tpu_custom_call.1} parent=1 // pred_check
      _
    $region89: #{tpu_custom_call.1} parent=1 // pred_check_branch
      %1682 = sbr.rel (0) target = $region91
    $region90: #{tpu_custom_call.1} parent=1 // pred_region
      _
    $region91: #{tpu_custom_call.1} parent=1 // pred_fallthru
      _
    %1683 = vsyncpa [#allocation8], 1
    %1684 = vsyncpa [#allocation14], 1
    %1685 = vsyncpa [#allocation17], 1
    %1686 = vsyncpa [#allocation9], 1
    %1687 = vsyncpa [#allocation11], 1

</llo_original>
